<compile_context>
chip_gen: v7x
topology: tpu7x:2x2x1
jax: 0.10.0
libtpu: 0.0.40
codegen_flags: <defaults>
</compile_context>

<pallas_src>
import functools

import jax
import jax.numpy as jnp
import numpy as np
from jax.experimental import pallas as pl
from jax.experimental.pallas import tpu as pltpu

HID = 16  # down_project out dim == GRU hidden size


def _microsem_kernel(B, T,
                     x_ref,                      # (T*B, D) time-major
                     wir_ref, wiz_ref, win_ref,  # (D, 16) fused input weights per gate
                     bir_ref, biz_ref, bin_ref,  # (1, 16) fused input biases per gate
                     whr_ref, whz_ref, whn_ref,  # (16, 16) hidden weights per gate
                     bhr_ref, bhz_ref, bhn_ref,  # (1, 16) hidden biases per gate
                     wout_ref, bout_ref,         # (16, 2), (1, 2)
                     o_ref):                     # (B, 2)
    x = x_ref[...]                               # (T*B, D)

    # --- fused (down_project + input-to-hidden) projection, hoisted out of the
    # recurrence: one dot per gate over ALL timesteps at once. ---
    gi_r = jnp.dot(x, wir_ref[...], preferred_element_type=jnp.float32) + bir_ref[...]
    gi_z = jnp.dot(x, wiz_ref[...], preferred_element_type=jnp.float32) + biz_ref[...]
    gi_n = jnp.dot(x, win_ref[...], preferred_element_type=jnp.float32) + bin_ref[...]

    whr = whr_ref[...]
    whz = whz_ref[...]
    whn = whn_ref[...]
    bhr = bhr_ref[...]
    bhz = bhz_ref[...]
    bhn = bhn_ref[...]

    # --- GRU recurrence (batch_first, 1 layer, h0 = 0). Per-gate dots keep
    # every gate output at lane offset 0 (no lane rotates). ---
    h = jnp.zeros((B, HID), jnp.float32)
    for t in range(T):                           # T=8 static -> unrolled
        lo = t * B                               # time-major row block for step t
        gr = gi_r[lo:lo + B, :]
        gz = gi_z[lo:lo + B, :]
        gn = gi_n[lo:lo + B, :]

        gh_r = jnp.dot(h, whr, preferred_element_type=jnp.float32) + bhr
        gh_z = jnp.dot(h, whz, preferred_element_type=jnp.float32) + bhz
        gh_n = jnp.dot(h, whn, preferred_element_type=jnp.float32) + bhn

        r = jax.nn.sigmoid(gr + gh_r)
        z = jax.nn.sigmoid(gz + gh_z)
        n = jnp.tanh(gn + r * gh_n)
        h = (1.0 - z) * n + z * h

    # --- output_binary head: (B, 16) @ (16, 2) + b ---
    o_ref[...] = jnp.dot(h, wout_ref[...],
                         preferred_element_type=jnp.float32) + bout_ref[...]


def microsem_forward(x_emb, p):
    """x_emb: (B, T, D) float32 embedded input; p: PyTorch-layout params."""
    B, T, D = x_emb.shape
    H = HID

    # ---- host-side algebraic fusion + layout prep (free wrapper plumbing) ----
    #   words = x @ wdp.T + bdp ; gi = words @ wih.T + bih
    #   => gi = x @ (wdp.T @ wih.T) + (bdp @ wih.T + bih)
    w_in_t = p["wdp"].T @ p["wih"].T              # (D, 48)  [r|z|n] columns
    b_in = p["bdp"] @ p["wih"].T + p["bih"]       # (1, 48)
    whh_t = p["whh"].T                            # (16, 48)
    wout_t = p["wout"].T                          # (16, 2)

    wir, wiz, winn = w_in_t[:, :H], w_in_t[:, H:2 * H], w_in_t[:, 2 * H:]
    bir, biz, binn = b_in[:, :H], b_in[:, H:2 * H], b_in[:, 2 * H:]
    whr, whz, whn = whh_t[:, :H], whh_t[:, H:2 * H], whh_t[:, 2 * H:]
    bhr, bhz, bhn = p["bhh"][:, :H], p["bhh"][:, H:2 * H], p["bhh"][:, 2 * H:]

    # time-major, pre-flattened input: row t*B + b corresponds to (t, b)
    x_tm = jnp.transpose(x_emb, (1, 0, 2)).reshape(T * B, D)

    vmem = pl.BlockSpec(memory_space=pltpu.MemorySpace.VMEM)
    kernel = functools.partial(_microsem_kernel, B, T)
    return pl.pallas_call(
        kernel,
        out_shape=jax.ShapeDtypeStruct((B, 2), jnp.float32),
        in_specs=[vmem] * 15,
        out_specs=vmem,
    )(x_tm, wir, wiz, winn, bir, biz, binn,
      whr, whz, whn, bhr, bhz, bhn, wout_t, p["bout"])


def microsem_reference(x_emb, p):
    """Pure-JAX reference mirroring the PyTorch forward exactly (un-fused)."""
    B, T, D = x_emb.shape
    words = x_emb.reshape(B * T, D) @ p["wdp"].T + p["bdp"]
    words = words.reshape(B, T, HID)
    h = jnp.zeros((B, HID), jnp.float32)
    for t in range(T):
        xt = words[:, t, :]
        gi = xt @ p["wih"].T + p["bih"]
        gh = h @ p["whh"].T + p["bhh"]
        r = jax.nn.sigmoid(gi[:, :HID] + gh[:, :HID])
        z = jax.nn.sigmoid(gi[:, HID:2 * HID] + gh[:, HID:2 * HID])
        n = jnp.tanh(gi[:, 2 * HID:] + r * gh[:, 2 * HID:])
        h = (1.0 - z) * n + z * h
    return h @ p["wout"].T + p["bout"]


if __name__ == "__main__":
    # Small deterministic setup: vocab=50, word_model.dim=32, batch=2, seq=8.
    # Dataset = SST_BINARY -> output_binary head (16 -> 2).
    V, D, B, T = 50, 32, 2, 8
    key = jax.random.PRNGKey(0)
    ks = jax.random.split(key, 10)

    # word_model = embedding lookup (glue, outside the Pallas kernel)
    emb_table = jax.random.normal(ks[0], (V, D), jnp.float32) * 0.1
    ids = jax.random.randint(ks[1], (B, T), 0, V)
    x_emb = emb_table[ids]                                  # (B, T, D)

    params = {
        "wdp":  jax.random.normal(ks[2], (HID, D), jnp.float32) * 0.1,
        "bdp":  jax.random.normal(ks[3], (1, HID), jnp.float32) * 0.1,
        "wih":  jax.random.normal(ks[4], (3 * HID, HID), jnp.float32) * 0.1,
        "whh":  jax.random.normal(ks[5], (3 * HID, HID), jnp.float32) * 0.1,
        "bih":  jax.random.normal(ks[6], (1, 3 * HID), jnp.float32) * 0.1,
        "bhh":  jax.random.normal(ks[7], (1, 3 * HID), jnp.float32) * 0.1,
        "wout": jax.random.normal(ks[8], (2, HID), jnp.float32) * 0.1,
        "bout": jax.random.normal(ks[9], (1, 2), jnp.float32) * 0.1,
    }

    out = jax.block_until_ready(microsem_forward(x_emb, params))
    ref = jax.block_until_ready(microsem_reference(x_emb, params))

    assert out.shape == (B, 2), out.shape
    # Fusion changes FP summation order slightly -> keep a small tolerance.
    np.testing.assert_allclose(np.asarray(out), np.asarray(ref),
                               rtol=1e-5, atol=1e-5)
    print("KERNEL_OK")
</pallas_src>

<mosaic_0001>
module attributes {stable_mosaic.version = 11 : i64} {
  func.func @_microsem_kernel(%arg0: memref<16x32xf32, #tpu.memory_space<vmem>>, %arg1: memref<32x16xf32, #tpu.memory_space<vmem>>, %arg2: memref<32x16xf32, #tpu.memory_space<vmem>>, %arg3: memref<32x16xf32, #tpu.memory_space<vmem>>, %arg4: memref<1x16xf32, #tpu.memory_space<vmem>>, %arg5: memref<1x16xf32, #tpu.memory_space<vmem>>, %arg6: memref<1x16xf32, #tpu.memory_space<vmem>>, %arg7: memref<16x16xf32, #tpu.memory_space<vmem>>, %arg8: memref<16x16xf32, #tpu.memory_space<vmem>>, %arg9: memref<16x16xf32, #tpu.memory_space<vmem>>, %arg10: memref<1x16xf32, #tpu.memory_space<vmem>>, %arg11: memref<1x16xf32, #tpu.memory_space<vmem>>, %arg12: memref<1x16xf32, #tpu.memory_space<vmem>>, %arg13: memref<16x2xf32, #tpu.memory_space<vmem>>, %arg14: memref<1x2xf32, #tpu.memory_space<vmem>>, %arg15: memref<2x2xf32, #tpu.memory_space<vmem>>) attributes {dimension_semantics = [], scalar_prefetch = 0 : i64, scratch_operands = 0 : i64, tpu.core_type = #tpu.core_type<tc>} {
    %c0 = arith.constant 0 : index
    %c0_0 = arith.constant 0 : index
    %0 = vector.load %arg0[%c0, %c0_0] : memref<16x32xf32, #tpu.memory_space<vmem>>, vector<16x32xf32>
    %c0_1 = arith.constant 0 : index
    %c0_2 = arith.constant 0 : index
    %1 = vector.load %arg1[%c0_1, %c0_2] : memref<32x16xf32, #tpu.memory_space<vmem>>, vector<32x16xf32>
    %cst = arith.constant dense<0.000000e+00> : vector<16x16xf32>
    %2 = tpu.matmul %0, %1, %cst {dimension_numbers = #tpu.dot_dimension_numbers<[1], [0], [0], [1], [0, 0, 1, 1], [], []>} : vector<16x32xf32>, vector<32x16xf32>, vector<16x16xf32> -> vector<16x16xf32>
    %c0_3 = arith.constant 0 : index
    %c0_4 = arith.constant 0 : index
    %3 = vector.load %arg4[%c0_3, %c0_4] : memref<1x16xf32, #tpu.memory_space<vmem>>, vector<1x16xf32>
    %4 = vector.broadcast %3 : vector<1x16xf32> to vector<16x16xf32>
    %5 = arith.addf %2, %4 : vector<16x16xf32>
    %c0_5 = arith.constant 0 : index
    %c0_6 = arith.constant 0 : index
    %6 = vector.load %arg2[%c0_5, %c0_6] : memref<32x16xf32, #tpu.memory_space<vmem>>, vector<32x16xf32>
    %cst_7 = arith.constant dense<0.000000e+00> : vector<16x16xf32>
    %7 = tpu.matmul %0, %6, %cst_7 {dimension_numbers = #tpu.dot_dimension_numbers<[1], [0], [0], [1], [0, 0, 1, 1], [], []>} : vector<16x32xf32>, vector<32x16xf32>, vector<16x16xf32> -> vector<16x16xf32>
    %c0_8 = arith.constant 0 : index
    %c0_9 = arith.constant 0 : index
    %8 = vector.load %arg5[%c0_8, %c0_9] : memref<1x16xf32, #tpu.memory_space<vmem>>, vector<1x16xf32>
    %9 = vector.broadcast %8 : vector<1x16xf32> to vector<16x16xf32>
    %10 = arith.addf %7, %9 : vector<16x16xf32>
    %c0_10 = arith.constant 0 : index
    %c0_11 = arith.constant 0 : index
    %11 = vector.load %arg3[%c0_10, %c0_11] : memref<32x16xf32, #tpu.memory_space<vmem>>, vector<32x16xf32>
    %cst_12 = arith.constant dense<0.000000e+00> : vector<16x16xf32>
    %12 = tpu.matmul %0, %11, %cst_12 {dimension_numbers = #tpu.dot_dimension_numbers<[1], [0], [0], [1], [0, 0, 1, 1], [], []>} : vector<16x32xf32>, vector<32x16xf32>, vector<16x16xf32> -> vector<16x16xf32>
    %c0_13 = arith.constant 0 : index
    %c0_14 = arith.constant 0 : index
    %13 = vector.load %arg6[%c0_13, %c0_14] : memref<1x16xf32, #tpu.memory_space<vmem>>, vector<1x16xf32>
    %14 = vector.broadcast %13 : vector<1x16xf32> to vector<16x16xf32>
    %15 = arith.addf %12, %14 : vector<16x16xf32>
    %c0_15 = arith.constant 0 : index
    %c0_16 = arith.constant 0 : index
    %16 = vector.load %arg7[%c0_15, %c0_16] : memref<16x16xf32, #tpu.memory_space<vmem>>, vector<16x16xf32>
    %c0_17 = arith.constant 0 : index
    %c0_18 = arith.constant 0 : index
    %17 = vector.load %arg8[%c0_17, %c0_18] : memref<16x16xf32, #tpu.memory_space<vmem>>, vector<16x16xf32>
    %c0_19 = arith.constant 0 : index
    %c0_20 = arith.constant 0 : index
    %18 = vector.load %arg9[%c0_19, %c0_20] : memref<16x16xf32, #tpu.memory_space<vmem>>, vector<16x16xf32>
    %c0_21 = arith.constant 0 : index
    %c0_22 = arith.constant 0 : index
    %19 = vector.load %arg10[%c0_21, %c0_22] : memref<1x16xf32, #tpu.memory_space<vmem>>, vector<1x16xf32>
    %c0_23 = arith.constant 0 : index
    %c0_24 = arith.constant 0 : index
    %20 = vector.load %arg11[%c0_23, %c0_24] : memref<1x16xf32, #tpu.memory_space<vmem>>, vector<1x16xf32>
    %c0_25 = arith.constant 0 : index
    %c0_26 = arith.constant 0 : index
    %21 = vector.load %arg12[%c0_25, %c0_26] : memref<1x16xf32, #tpu.memory_space<vmem>>, vector<1x16xf32>
    %cst_27 = arith.constant 0.000000e+00 : f32
    %22 = vector.broadcast %cst_27 : f32 to vector<2x16xf32>
    %23 = vector.extract_strided_slice %5 {offsets = [0, 0], sizes = [2, 16], strides = [1, 1]} : vector<16x16xf32> to vector<2x16xf32>
    %24 = vector.extract_strided_slice %10 {offsets = [0, 0], sizes = [2, 16], strides = [1, 1]} : vector<16x16xf32> to vector<2x16xf32>
    %25 = vector.extract_strided_slice %15 {offsets = [0, 0], sizes = [2, 16], strides = [1, 1]} : vector<16x16xf32> to vector<2x16xf32>
    %cst_28 = arith.constant dense<0.000000e+00> : vector<2x16xf32>
    %26 = tpu.matmul %22, %16, %cst_28 {dimension_numbers = #tpu.dot_dimension_numbers<[1], [0], [0], [1], [0, 0, 1, 1], [], []>} : vector<2x16xf32>, vector<16x16xf32>, vector<2x16xf32> -> vector<2x16xf32>
    %27 = vector.broadcast %19 : vector<1x16xf32> to vector<2x16xf32>
    %28 = arith.addf %26, %27 : vector<2x16xf32>
    %cst_29 = arith.constant dense<0.000000e+00> : vector<2x16xf32>
    %29 = tpu.matmul %22, %17, %cst_29 {dimension_numbers = #tpu.dot_dimension_numbers<[1], [0], [0], [1], [0, 0, 1, 1], [], []>} : vector<2x16xf32>, vector<16x16xf32>, vector<2x16xf32> -> vector<2x16xf32>
    %30 = vector.broadcast %20 : vector<1x16xf32> to vector<2x16xf32>
    %31 = arith.addf %29, %30 : vector<2x16xf32>
    %cst_30 = arith.constant dense<0.000000e+00> : vector<2x16xf32>
    %32 = tpu.matmul %22, %18, %cst_30 {dimension_numbers = #tpu.dot_dimension_numbers<[1], [0], [0], [1], [0, 0, 1, 1], [], []>} : vector<2x16xf32>, vector<16x16xf32>, vector<2x16xf32> -> vector<2x16xf32>
    %33 = vector.broadcast %21 : vector<1x16xf32> to vector<2x16xf32>
    %34 = arith.addf %32, %33 : vector<2x16xf32>
    %35 = arith.addf %23, %28 : vector<2x16xf32>
    %36 = arith.negf %35 : vector<2x16xf32>
    %37 = math.exp %36 : vector<2x16xf32>
    %cst_31 = arith.constant 1.000000e+00 : f32
    %38 = vector.broadcast %cst_31 : f32 to vector<2x16xf32>
    %39 = arith.addf %38, %37 : vector<2x16xf32>
    %40 = arith.divf %38, %39 : vector<2x16xf32>
    %41 = arith.addf %24, %31 : vector<2x16xf32>
    %42 = arith.negf %41 : vector<2x16xf32>
    %43 = math.exp %42 : vector<2x16xf32>
    %cst_32 = arith.constant 1.000000e+00 : f32
    %44 = vector.broadcast %cst_32 : f32 to vector<2x16xf32>
    %45 = arith.addf %44, %43 : vector<2x16xf32>
    %46 = arith.divf %44, %45 : vector<2x16xf32>
    %47 = arith.mulf %40, %34 : vector<2x16xf32>
    %48 = arith.addf %25, %47 : vector<2x16xf32>
    %49 = math.tanh %48 : vector<2x16xf32>
    %cst_33 = arith.constant 1.000000e+00 : f32
    %50 = vector.broadcast %cst_33 : f32 to vector<2x16xf32>
    %51 = arith.subf %50, %46 : vector<2x16xf32>
    %52 = arith.mulf %51, %49 : vector<2x16xf32>
    %53 = arith.mulf %46, %22 : vector<2x16xf32>
    %54 = arith.addf %52, %53 : vector<2x16xf32>
    %55 = vector.extract_strided_slice %5 {offsets = [2, 0], sizes = [2, 16], strides = [1, 1]} : vector<16x16xf32> to vector<2x16xf32>
    %56 = vector.extract_strided_slice %10 {offsets = [2, 0], sizes = [2, 16], strides = [1, 1]} : vector<16x16xf32> to vector<2x16xf32>
    %57 = vector.extract_strided_slice %15 {offsets = [2, 0], sizes = [2, 16], strides = [1, 1]} : vector<16x16xf32> to vector<2x16xf32>
    %cst_34 = arith.constant dense<0.000000e+00> : vector<2x16xf32>
    %58 = tpu.matmul %54, %16, %cst_34 {dimension_numbers = #tpu.dot_dimension_numbers<[1], [0], [0], [1], [0, 0, 1, 1], [], []>} : vector<2x16xf32>, vector<16x16xf32>, vector<2x16xf32> -> vector<2x16xf32>
    %59 = vector.broadcast %19 : vector<1x16xf32> to vector<2x16xf32>
    %60 = arith.addf %58, %59 : vector<2x16xf32>
    %cst_35 = arith.constant dense<0.000000e+00> : vector<2x16xf32>
    %61 = tpu.matmul %54, %17, %cst_35 {dimension_numbers = #tpu.dot_dimension_numbers<[1], [0], [0], [1], [0, 0, 1, 1], [], []>} : vector<2x16xf32>, vector<16x16xf32>, vector<2x16xf32> -> vector<2x16xf32>
    %62 = vector.broadcast %20 : vector<1x16xf32> to vector<2x16xf32>
    %63 = arith.addf %61, %62 : vector<2x16xf32>
    %cst_36 = arith.constant dense<0.000000e+00> : vector<2x16xf32>
    %64 = tpu.matmul %54, %18, %cst_36 {dimension_numbers = #tpu.dot_dimension_numbers<[1], [0], [0], [1], [0, 0, 1, 1], [], []>} : vector<2x16xf32>, vector<16x16xf32>, vector<2x16xf32> -> vector<2x16xf32>
    %65 = vector.broadcast %21 : vector<1x16xf32> to vector<2x16xf32>
    %66 = arith.addf %64, %65 : vector<2x16xf32>
    %67 = arith.addf %55, %60 : vector<2x16xf32>
    %68 = arith.negf %67 : vector<2x16xf32>
    %69 = math.exp %68 : vector<2x16xf32>
    %cst_37 = arith.constant 1.000000e+00 : f32
    %70 = vector.broadcast %cst_37 : f32 to vector<2x16xf32>
    %71 = arith.addf %70, %69 : vector<2x16xf32>
    %72 = arith.divf %70, %71 : vector<2x16xf32>
    %73 = arith.addf %56, %63 : vector<2x16xf32>
    %74 = arith.negf %73 : vector<2x16xf32>
    %75 = math.exp %74 : vector<2x16xf32>
    %cst_38 = arith.constant 1.000000e+00 : f32
    %76 = vector.broadcast %cst_38 : f32 to vector<2x16xf32>
    %77 = arith.addf %76, %75 : vector<2x16xf32>
    %78 = arith.divf %76, %77 : vector<2x16xf32>
    %79 = arith.mulf %72, %66 : vector<2x16xf32>
    %80 = arith.addf %57, %79 : vector<2x16xf32>
    %81 = math.tanh %80 : vector<2x16xf32>
    %cst_39 = arith.constant 1.000000e+00 : f32
    %82 = vector.broadcast %cst_39 : f32 to vector<2x16xf32>
    %83 = arith.subf %82, %78 : vector<2x16xf32>
    %84 = arith.mulf %83, %81 : vector<2x16xf32>
    %85 = arith.mulf %78, %54 : vector<2x16xf32>
    %86 = arith.addf %84, %85 : vector<2x16xf32>
    %87 = vector.extract_strided_slice %5 {offsets = [4, 0], sizes = [2, 16], strides = [1, 1]} : vector<16x16xf32> to vector<2x16xf32>
    %88 = vector.extract_strided_slice %10 {offsets = [4, 0], sizes = [2, 16], strides = [1, 1]} : vector<16x16xf32> to vector<2x16xf32>
    %89 = vector.extract_strided_slice %15 {offsets = [4, 0], sizes = [2, 16], strides = [1, 1]} : vector<16x16xf32> to vector<2x16xf32>
    %cst_40 = arith.constant dense<0.000000e+00> : vector<2x16xf32>
    %90 = tpu.matmul %86, %16, %cst_40 {dimension_numbers = #tpu.dot_dimension_numbers<[1], [0], [0], [1], [0, 0, 1, 1], [], []>} : vector<2x16xf32>, vector<16x16xf32>, vector<2x16xf32> -> vector<2x16xf32>
    %91 = vector.broadcast %19 : vector<1x16xf32> to vector<2x16xf32>
    %92 = arith.addf %90, %91 : vector<2x16xf32>
    %cst_41 = arith.constant dense<0.000000e+00> : vector<2x16xf32>
    %93 = tpu.matmul %86, %17, %cst_41 {dimension_numbers = #tpu.dot_dimension_numbers<[1], [0], [0], [1], [0, 0, 1, 1], [], []>} : vector<2x16xf32>, vector<16x16xf32>, vector<2x16xf32> -> vector<2x16xf32>
    %94 = vector.broadcast %20 : vector<1x16xf32> to vector<2x16xf32>
    %95 = arith.addf %93, %94 : vector<2x16xf32>
    %cst_42 = arith.constant dense<0.000000e+00> : vector<2x16xf32>
    %96 = tpu.matmul %86, %18, %cst_42 {dimension_numbers = #tpu.dot_dimension_numbers<[1], [0], [0], [1], [0, 0, 1, 1], [], []>} : vector<2x16xf32>, vector<16x16xf32>, vector<2x16xf32> -> vector<2x16xf32>
    %97 = vector.broadcast %21 : vector<1x16xf32> to vector<2x16xf32>
    %98 = arith.addf %96, %97 : vector<2x16xf32>
    %99 = arith.addf %87, %92 : vector<2x16xf32>
    %100 = arith.negf %99 : vector<2x16xf32>
    %101 = math.exp %100 : vector<2x16xf32>
    %cst_43 = arith.constant 1.000000e+00 : f32
    %102 = vector.broadcast %cst_43 : f32 to vector<2x16xf32>
    %103 = arith.addf %102, %101 : vector<2x16xf32>
    %104 = arith.divf %102, %103 : vector<2x16xf32>
    %105 = arith.addf %88, %95 : vector<2x16xf32>
    %106 = arith.negf %105 : vector<2x16xf32>
    %107 = math.exp %106 : vector<2x16xf32>
    %cst_44 = arith.constant 1.000000e+00 : f32
    %108 = vector.broadcast %cst_44 : f32 to vector<2x16xf32>
    %109 = arith.addf %108, %107 : vector<2x16xf32>
    %110 = arith.divf %108, %109 : vector<2x16xf32>
    %111 = arith.mulf %104, %98 : vector<2x16xf32>
    %112 = arith.addf %89, %111 : vector<2x16xf32>
    %113 = math.tanh %112 : vector<2x16xf32>
    %cst_45 = arith.constant 1.000000e+00 : f32
    %114 = vector.broadcast %cst_45 : f32 to vector<2x16xf32>
    %115 = arith.subf %114, %110 : vector<2x16xf32>
    %116 = arith.mulf %115, %113 : vector<2x16xf32>
    %117 = arith.mulf %110, %86 : vector<2x16xf32>
    %118 = arith.addf %116, %117 : vector<2x16xf32>
    %119 = vector.extract_strided_slice %5 {offsets = [6, 0], sizes = [2, 16], strides = [1, 1]} : vector<16x16xf32> to vector<2x16xf32>
    %120 = vector.extract_strided_slice %10 {offsets = [6, 0], sizes = [2, 16], strides = [1, 1]} : vector<16x16xf32> to vector<2x16xf32>
    %121 = vector.extract_strided_slice %15 {offsets = [6, 0], sizes = [2, 16], strides = [1, 1]} : vector<16x16xf32> to vector<2x16xf32>
    %cst_46 = arith.constant dense<0.000000e+00> : vector<2x16xf32>
    %122 = tpu.matmul %118, %16, %cst_46 {dimension_numbers = #tpu.dot_dimension_numbers<[1], [0], [0], [1], [0, 0, 1, 1], [], []>} : vector<2x16xf32>, vector<16x16xf32>, vector<2x16xf32> -> vector<2x16xf32>
    %123 = vector.broadcast %19 : vector<1x16xf32> to vector<2x16xf32>
    %124 = arith.addf %122, %123 : vector<2x16xf32>
    %cst_47 = arith.constant dense<0.000000e+00> : vector<2x16xf32>
    %125 = tpu.matmul %118, %17, %cst_47 {dimension_numbers = #tpu.dot_dimension_numbers<[1], [0], [0], [1], [0, 0, 1, 1], [], []>} : vector<2x16xf32>, vector<16x16xf32>, vector<2x16xf32> -> vector<2x16xf32>
    %126 = vector.broadcast %20 : vector<1x16xf32> to vector<2x16xf32>
    %127 = arith.addf %125, %126 : vector<2x16xf32>
    %cst_48 = arith.constant dense<0.000000e+00> : vector<2x16xf32>
    %128 = tpu.matmul %118, %18, %cst_48 {dimension_numbers = #tpu.dot_dimension_numbers<[1], [0], [0], [1], [0, 0, 1, 1], [], []>} : vector<2x16xf32>, vector<16x16xf32>, vector<2x16xf32> -> vector<2x16xf32>
    %129 = vector.broadcast %21 : vector<1x16xf32> to vector<2x16xf32>
    %130 = arith.addf %128, %129 : vector<2x16xf32>
    %131 = arith.addf %119, %124 : vector<2x16xf32>
    %132 = arith.negf %131 : vector<2x16xf32>
    %133 = math.exp %132 : vector<2x16xf32>
    %cst_49 = arith.constant 1.000000e+00 : f32
    %134 = vector.broadcast %cst_49 : f32 to vector<2x16xf32>
    %135 = arith.addf %134, %133 : vector<2x16xf32>
    %136 = arith.divf %134, %135 : vector<2x16xf32>
    %137 = arith.addf %120, %127 : vector<2x16xf32>
    %138 = arith.negf %137 : vector<2x16xf32>
    %139 = math.exp %138 : vector<2x16xf32>
    %cst_50 = arith.constant 1.000000e+00 : f32
    %140 = vector.broadcast %cst_50 : f32 to vector<2x16xf32>
    %141 = arith.addf %140, %139 : vector<2x16xf32>
    %142 = arith.divf %140, %141 : vector<2x16xf32>
    %143 = arith.mulf %136, %130 : vector<2x16xf32>
    %144 = arith.addf %121, %143 : vector<2x16xf32>
    %145 = math.tanh %144 : vector<2x16xf32>
    %cst_51 = arith.constant 1.000000e+00 : f32
    %146 = vector.broadcast %cst_51 : f32 to vector<2x16xf32>
    %147 = arith.subf %146, %142 : vector<2x16xf32>
    %148 = arith.mulf %147, %145 : vector<2x16xf32>
    %149 = arith.mulf %142, %118 : vector<2x16xf32>
    %150 = arith.addf %148, %149 : vector<2x16xf32>
    %151 = vector.extract_strided_slice %5 {offsets = [8, 0], sizes = [2, 16], strides = [1, 1]} : vector<16x16xf32> to vector<2x16xf32>
    %152 = vector.extract_strided_slice %10 {offsets = [8, 0], sizes = [2, 16], strides = [1, 1]} : vector<16x16xf32> to vector<2x16xf32>
    %153 = vector.extract_strided_slice %15 {offsets = [8, 0], sizes = [2, 16], strides = [1, 1]} : vector<16x16xf32> to vector<2x16xf32>
    %cst_52 = arith.constant dense<0.000000e+00> : vector<2x16xf32>
    %154 = tpu.matmul %150, %16, %cst_52 {dimension_numbers = #tpu.dot_dimension_numbers<[1], [0], [0], [1], [0, 0, 1, 1], [], []>} : vector<2x16xf32>, vector<16x16xf32>, vector<2x16xf32> -> vector<2x16xf32>
    %155 = vector.broadcast %19 : vector<1x16xf32> to vector<2x16xf32>
    %156 = arith.addf %154, %155 : vector<2x16xf32>
    %cst_53 = arith.constant dense<0.000000e+00> : vector<2x16xf32>
    %157 = tpu.matmul %150, %17, %cst_53 {dimension_numbers = #tpu.dot_dimension_numbers<[1], [0], [0], [1], [0, 0, 1, 1], [], []>} : vector<2x16xf32>, vector<16x16xf32>, vector<2x16xf32> -> vector<2x16xf32>
    %158 = vector.broadcast %20 : vector<1x16xf32> to vector<2x16xf32>
    %159 = arith.addf %157, %158 : vector<2x16xf32>
    %cst_54 = arith.constant dense<0.000000e+00> : vector<2x16xf32>
    %160 = tpu.matmul %150, %18, %cst_54 {dimension_numbers = #tpu.dot_dimension_numbers<[1], [0], [0], [1], [0, 0, 1, 1], [], []>} : vector<2x16xf32>, vector<16x16xf32>, vector<2x16xf32> -> vector<2x16xf32>
    %161 = vector.broadcast %21 : vector<1x16xf32> to vector<2x16xf32>
    %162 = arith.addf %160, %161 : vector<2x16xf32>
    %163 = arith.addf %151, %156 : vector<2x16xf32>
    %164 = arith.negf %163 : vector<2x16xf32>
    %165 = math.exp %164 : vector<2x16xf32>
    %cst_55 = arith.constant 1.000000e+00 : f32
    %166 = vector.broadcast %cst_55 : f32 to vector<2x16xf32>
    %167 = arith.addf %166, %165 : vector<2x16xf32>
    %168 = arith.divf %166, %167 : vector<2x16xf32>
    %169 = arith.addf %152, %159 : vector<2x16xf32>
    %170 = arith.negf %169 : vector<2x16xf32>
    %171 = math.exp %170 : vector<2x16xf32>
    %cst_56 = arith.constant 1.000000e+00 : f32
    %172 = vector.broadcast %cst_56 : f32 to vector<2x16xf32>
    %173 = arith.addf %172, %171 : vector<2x16xf32>
    %174 = arith.divf %172, %173 : vector<2x16xf32>
    %175 = arith.mulf %168, %162 : vector<2x16xf32>
    %176 = arith.addf %153, %175 : vector<2x16xf32>
    %177 = math.tanh %176 : vector<2x16xf32>
    %cst_57 = arith.constant 1.000000e+00 : f32
    %178 = vector.broadcast %cst_57 : f32 to vector<2x16xf32>
    %179 = arith.subf %178, %174 : vector<2x16xf32>
    %180 = arith.mulf %179, %177 : vector<2x16xf32>
    %181 = arith.mulf %174, %150 : vector<2x16xf32>
    %182 = arith.addf %180, %181 : vector<2x16xf32>
    %183 = vector.extract_strided_slice %5 {offsets = [10, 0], sizes = [2, 16], strides = [1, 1]} : vector<16x16xf32> to vector<2x16xf32>
    %184 = vector.extract_strided_slice %10 {offsets = [10, 0], sizes = [2, 16], strides = [1, 1]} : vector<16x16xf32> to vector<2x16xf32>
    %185 = vector.extract_strided_slice %15 {offsets = [10, 0], sizes = [2, 16], strides = [1, 1]} : vector<16x16xf32> to vector<2x16xf32>
    %cst_58 = arith.constant dense<0.000000e+00> : vector<2x16xf32>
    %186 = tpu.matmul %182, %16, %cst_58 {dimension_numbers = #tpu.dot_dimension_numbers<[1], [0], [0], [1], [0, 0, 1, 1], [], []>} : vector<2x16xf32>, vector<16x16xf32>, vector<2x16xf32> -> vector<2x16xf32>
    %187 = vector.broadcast %19 : vector<1x16xf32> to vector<2x16xf32>
    %188 = arith.addf %186, %187 : vector<2x16xf32>
    %cst_59 = arith.constant dense<0.000000e+00> : vector<2x16xf32>
    %189 = tpu.matmul %182, %17, %cst_59 {dimension_numbers = #tpu.dot_dimension_numbers<[1], [0], [0], [1], [0, 0, 1, 1], [], []>} : vector<2x16xf32>, vector<16x16xf32>, vector<2x16xf32> -> vector<2x16xf32>
    %190 = vector.broadcast %20 : vector<1x16xf32> to vector<2x16xf32>
    %191 = arith.addf %189, %190 : vector<2x16xf32>
    %cst_60 = arith.constant dense<0.000000e+00> : vector<2x16xf32>
    %192 = tpu.matmul %182, %18, %cst_60 {dimension_numbers = #tpu.dot_dimension_numbers<[1], [0], [0], [1], [0, 0, 1, 1], [], []>} : vector<2x16xf32>, vector<16x16xf32>, vector<2x16xf32> -> vector<2x16xf32>
    %193 = vector.broadcast %21 : vector<1x16xf32> to vector<2x16xf32>
    %194 = arith.addf %192, %193 : vector<2x16xf32>
    %195 = arith.addf %183, %188 : vector<2x16xf32>
    %196 = arith.negf %195 : vector<2x16xf32>
    %197 = math.exp %196 : vector<2x16xf32>
    %cst_61 = arith.constant 1.000000e+00 : f32
    %198 = vector.broadcast %cst_61 : f32 to vector<2x16xf32>
    %199 = arith.addf %198, %197 : vector<2x16xf32>
    %200 = arith.divf %198, %199 : vector<2x16xf32>
    %201 = arith.addf %184, %191 : vector<2x16xf32>
    %202 = arith.negf %201 : vector<2x16xf32>
    %203 = math.exp %202 : vector<2x16xf32>
    %cst_62 = arith.constant 1.000000e+00 : f32
    %204 = vector.broadcast %cst_62 : f32 to vector<2x16xf32>
    %205 = arith.addf %204, %203 : vector<2x16xf32>
    %206 = arith.divf %204, %205 : vector<2x16xf32>
    %207 = arith.mulf %200, %194 : vector<2x16xf32>
    %208 = arith.addf %185, %207 : vector<2x16xf32>
    %209 = math.tanh %208 : vector<2x16xf32>
    %cst_63 = arith.constant 1.000000e+00 : f32
    %210 = vector.broadcast %cst_63 : f32 to vector<2x16xf32>
    %211 = arith.subf %210, %206 : vector<2x16xf32>
    %212 = arith.mulf %211, %209 : vector<2x16xf32>
    %213 = arith.mulf %206, %182 : vector<2x16xf32>
    %214 = arith.addf %212, %213 : vector<2x16xf32>
    %215 = vector.extract_strided_slice %5 {offsets = [12, 0], sizes = [2, 16], strides = [1, 1]} : vector<16x16xf32> to vector<2x16xf32>
    %216 = vector.extract_strided_slice %10 {offsets = [12, 0], sizes = [2, 16], strides = [1, 1]} : vector<16x16xf32> to vector<2x16xf32>
    %217 = vector.extract_strided_slice %15 {offsets = [12, 0], sizes = [2, 16], strides = [1, 1]} : vector<16x16xf32> to vector<2x16xf32>
    %cst_64 = arith.constant dense<0.000000e+00> : vector<2x16xf32>
    %218 = tpu.matmul %214, %16, %cst_64 {dimension_numbers = #tpu.dot_dimension_numbers<[1], [0], [0], [1], [0, 0, 1, 1], [], []>} : vector<2x16xf32>, vector<16x16xf32>, vector<2x16xf32> -> vector<2x16xf32>
    %219 = vector.broadcast %19 : vector<1x16xf32> to vector<2x16xf32>
    %220 = arith.addf %218, %219 : vector<2x16xf32>
    %cst_65 = arith.constant dense<0.000000e+00> : vector<2x16xf32>
    %221 = tpu.matmul %214, %17, %cst_65 {dimension_numbers = #tpu.dot_dimension_numbers<[1], [0], [0], [1], [0, 0, 1, 1], [], []>} : vector<2x16xf32>, vector<16x16xf32>, vector<2x16xf32> -> vector<2x16xf32>
    %222 = vector.broadcast %20 : vector<1x16xf32> to vector<2x16xf32>
    %223 = arith.addf %221, %222 : vector<2x16xf32>
    %cst_66 = arith.constant dense<0.000000e+00> : vector<2x16xf32>
    %224 = tpu.matmul %214, %18, %cst_66 {dimension_numbers = #tpu.dot_dimension_numbers<[1], [0], [0], [1], [0, 0, 1, 1], [], []>} : vector<2x16xf32>, vector<16x16xf32>, vector<2x16xf32> -> vector<2x16xf32>
    %225 = vector.broadcast %21 : vector<1x16xf32> to vector<2x16xf32>
    %226 = arith.addf %224, %225 : vector<2x16xf32>
    %227 = arith.addf %215, %220 : vector<2x16xf32>
    %228 = arith.negf %227 : vector<2x16xf32>
    %229 = math.exp %228 : vector<2x16xf32>
    %cst_67 = arith.constant 1.000000e+00 : f32
    %230 = vector.broadcast %cst_67 : f32 to vector<2x16xf32>
    %231 = arith.addf %230, %229 : vector<2x16xf32>
    %232 = arith.divf %230, %231 : vector<2x16xf32>
    %233 = arith.addf %216, %223 : vector<2x16xf32>
    %234 = arith.negf %233 : vector<2x16xf32>
    %235 = math.exp %234 : vector<2x16xf32>
    %cst_68 = arith.constant 1.000000e+00 : f32
    %236 = vector.broadcast %cst_68 : f32 to vector<2x16xf32>
    %237 = arith.addf %236, %235 : vector<2x16xf32>
    %238 = arith.divf %236, %237 : vector<2x16xf32>
    %239 = arith.mulf %232, %226 : vector<2x16xf32>
    %240 = arith.addf %217, %239 : vector<2x16xf32>
    %241 = math.tanh %240 : vector<2x16xf32>
    %cst_69 = arith.constant 1.000000e+00 : f32
    %242 = vector.broadcast %cst_69 : f32 to vector<2x16xf32>
    %243 = arith.subf %242, %238 : vector<2x16xf32>
    %244 = arith.mulf %243, %241 : vector<2x16xf32>
    %245 = arith.mulf %238, %214 : vector<2x16xf32>
    %246 = arith.addf %244, %245 : vector<2x16xf32>
    %247 = vector.extract_strided_slice %5 {offsets = [14, 0], sizes = [2, 16], strides = [1, 1]} : vector<16x16xf32> to vector<2x16xf32>
    %248 = vector.extract_strided_slice %10 {offsets = [14, 0], sizes = [2, 16], strides = [1, 1]} : vector<16x16xf32> to vector<2x16xf32>
    %249 = vector.extract_strided_slice %15 {offsets = [14, 0], sizes = [2, 16], strides = [1, 1]} : vector<16x16xf32> to vector<2x16xf32>
    %cst_70 = arith.constant dense<0.000000e+00> : vector<2x16xf32>
    %250 = tpu.matmul %246, %16, %cst_70 {dimension_numbers = #tpu.dot_dimension_numbers<[1], [0], [0], [1], [0, 0, 1, 1], [], []>} : vector<2x16xf32>, vector<16x16xf32>, vector<2x16xf32> -> vector<2x16xf32>
    %251 = vector.broadcast %19 : vector<1x16xf32> to vector<2x16xf32>
    %252 = arith.addf %250, %251 : vector<2x16xf32>
    %cst_71 = arith.constant dense<0.000000e+00> : vector<2x16xf32>
    %253 = tpu.matmul %246, %17, %cst_71 {dimension_numbers = #tpu.dot_dimension_numbers<[1], [0], [0], [1], [0, 0, 1, 1], [], []>} : vector<2x16xf32>, vector<16x16xf32>, vector<2x16xf32> -> vector<2x16xf32>
    %254 = vector.broadcast %20 : vector<1x16xf32> to vector<2x16xf32>
    %255 = arith.addf %253, %254 : vector<2x16xf32>
    %cst_72 = arith.constant dense<0.000000e+00> : vector<2x16xf32>
    %256 = tpu.matmul %246, %18, %cst_72 {dimension_numbers = #tpu.dot_dimension_numbers<[1], [0], [0], [1], [0, 0, 1, 1], [], []>} : vector<2x16xf32>, vector<16x16xf32>, vector<2x16xf32> -> vector<2x16xf32>
    %257 = vector.broadcast %21 : vector<1x16xf32> to vector<2x16xf32>
    %258 = arith.addf %256, %257 : vector<2x16xf32>
    %259 = arith.addf %247, %252 : vector<2x16xf32>
    %260 = arith.negf %259 : vector<2x16xf32>
    %261 = math.exp %260 : vector<2x16xf32>
    %cst_73 = arith.constant 1.000000e+00 : f32
    %262 = vector.broadcast %cst_73 : f32 to vector<2x16xf32>
    %263 = arith.addf %262, %261 : vector<2x16xf32>
    %264 = arith.divf %262, %263 : vector<2x16xf32>
    %265 = arith.addf %248, %255 : vector<2x16xf32>
    %266 = arith.negf %265 : vector<2x16xf32>
    %267 = math.exp %266 : vector<2x16xf32>
    %cst_74 = arith.constant 1.000000e+00 : f32
    %268 = vector.broadcast %cst_74 : f32 to vector<2x16xf32>
    %269 = arith.addf %268, %267 : vector<2x16xf32>
    %270 = arith.divf %268, %269 : vector<2x16xf32>
    %271 = arith.mulf %264, %258 : vector<2x16xf32>
    %272 = arith.addf %249, %271 : vector<2x16xf32>
    %273 = math.tanh %272 : vector<2x16xf32>
    %cst_75 = arith.constant 1.000000e+00 : f32
    %274 = vector.broadcast %cst_75 : f32 to vector<2x16xf32>
    %275 = arith.subf %274, %270 : vector<2x16xf32>
    %276 = arith.mulf %275, %273 : vector<2x16xf32>
    %277 = arith.mulf %270, %246 : vector<2x16xf32>
    %278 = arith.addf %276, %277 : vector<2x16xf32>
    %c0_76 = arith.constant 0 : index
    %c0_77 = arith.constant 0 : index
    %279 = vector.load %arg13[%c0_76, %c0_77] : memref<16x2xf32, #tpu.memory_space<vmem>>, vector<16x2xf32>
    %cst_78 = arith.constant dense<0.000000e+00> : vector<2x2xf32>
    %280 = tpu.matmul %278, %279, %cst_78 {dimension_numbers = #tpu.dot_dimension_numbers<[1], [0], [0], [1], [0, 0, 1, 1], [], []>} : vector<2x16xf32>, vector<16x2xf32>, vector<2x2xf32> -> vector<2x2xf32>
    %c0_79 = arith.constant 0 : index
    %c0_80 = arith.constant 0 : index
    %281 = vector.load %arg14[%c0_79, %c0_80] : memref<1x2xf32, #tpu.memory_space<vmem>>, vector<1x2xf32>
    %282 = vector.broadcast %281 : vector<1x2xf32> to vector<2x2xf32>
    %283 = arith.addf %280, %282 : vector<2x2xf32>
    %c0_81 = arith.constant 0 : index
    %c0_82 = arith.constant 0 : index
    %284 = vector.load %arg15[%c0_81, %c0_82] : memref<2x2xf32, #tpu.memory_space<vmem>>, vector<2x2xf32>
    tpu.vector_store %arg15[%c0_81, %c0_82], %283 {strides = array<i32>} : memref<2x2xf32, #tpu.memory_space<vmem>>, vector<2x2xf32>,
    return
  }
}

</mosaic_0001>

<llo_original>
// kernel: tpu_custom_call.1
$region0: #{tpu_custom_call.1}
  #allocation0 [shape = 'u32[]', space=smem, size = 0x4, offset = 0x4, fixed_abs, tag = 'smem constant byte address 0x4 - core index']
  #allocation1 [shape = 'u32[144,128]{1,0:T(1,128)}', space=vmem, size = 0x12000, scoped, tag = 'internal scratch']
  %s0 = inlined_call_operand.vmem [shape: f32[16,32], index: 0, kind: input, shape index: {}]
  %s1 = inlined_call_operand.vmem [shape: f32[32,16], index: 1, kind: input, shape index: {}]
  %s2 = inlined_call_operand.vmem [shape: f32[32,16], index: 2, kind: input, shape index: {}]
  %s3 = inlined_call_operand.vmem [shape: f32[32,16], index: 3, kind: input, shape index: {}]
  %s4 = inlined_call_operand.vmem [shape: f32[1,16], index: 4, kind: input, shape index: {}]
  %s5 = inlined_call_operand.vmem [shape: f32[1,16], index: 5, kind: input, shape index: {}]
  %s6 = inlined_call_operand.vmem [shape: f32[1,16], index: 6, kind: input, shape index: {}]
  %s7 = inlined_call_operand.vmem [shape: f32[16,16], index: 7, kind: input, shape index: {}]
  %s8 = inlined_call_operand.vmem [shape: f32[16,16], index: 8, kind: input, shape index: {}]
  %s9 = inlined_call_operand.vmem [shape: f32[16,16], index: 9, kind: input, shape index: {}]
  %s10 = inlined_call_operand.vmem [shape: f32[1,16], index: 10, kind: input, shape index: {}]
  %s11 = inlined_call_operand.vmem [shape: f32[1,16], index: 11, kind: input, shape index: {}]
  %s12 = inlined_call_operand.vmem [shape: f32[1,16], index: 12, kind: input, shape index: {}]
  %s13 = inlined_call_operand.vmem [shape: f32[16,2], index: 13, kind: input, shape index: {}]
  %s14 = inlined_call_operand.vmem [shape: f32[1,2], index: 14, kind: input, shape index: {}]
  %s15 = inlined_call_operand.hbm [shape: f32[2,2], index: 15, kind: output, shape index: {}]
  %s16 = sld [smem:[#allocation0]]
  $region70: #{tpu_custom_call.1} parent=0
    _
  %s18 = ssub.s32 1, %s16
  %s19 = scalar_select 0, %s18, %s16
  $region1: #{tpu_custom_call.1} parent=0
    #allocation2 [shape = 'u8[1024]{0}', space=vmem, size = 0x400, scoped, tag = 'output window, operand 0, single buffered']
    #allocation3 [shape = 's32[1]{0}', space=sflag, size = 0x4, scoped, tag = 'scoped memory for tpu_custom_call.1']
    %20 = vsyncpa [#allocation3], 0
    // Predicated region
    $region2: #{tpu_custom_call.1} parent=1 // pred_check
      _
    $region3: #{tpu_custom_call.1} parent=1 // pred_check_branch
      %22 = sbr.rel (0) target = $region5
    $region4: #{tpu_custom_call.1} parent=1 // pred_region
      _
    $region5: #{tpu_custom_call.1} parent=1 // pred_fallthru
      _
    // Predicated region
    $region6: #{tpu_custom_call.1} parent=1 // pred_check
      _
    $region7: #{tpu_custom_call.1} parent=1 // pred_check_branch
      %24 = sbr.rel (0) target = $region9
    $region8: #{tpu_custom_call.1} parent=1 // pred_region
      _
    $region9: #{tpu_custom_call.1} parent=1 // pred_fallthru
      _
    // Predicated region
    $region10: #{tpu_custom_call.1} parent=1 // pred_check
      _
    $region11: #{tpu_custom_call.1} parent=1 // pred_check_branch
      %26 = sbr.rel (0) target = $region13
    $region12: #{tpu_custom_call.1} parent=1 // pred_region
      _
    $region13: #{tpu_custom_call.1} parent=1 // pred_fallthru
      _
    // Predicated region
    $region14: #{tpu_custom_call.1} parent=1 // pred_check
      _
    $region15: #{tpu_custom_call.1} parent=1 // pred_check_branch
      %28 = sbr.rel (0) target = $region17
    $region16: #{tpu_custom_call.1} parent=1 // pred_region
      _
    $region17: #{tpu_custom_call.1} parent=1 // pred_fallthru
      _
    // Predicated region
    $region18: #{tpu_custom_call.1} parent=1 // pred_check
      _
    $region19: #{tpu_custom_call.1} parent=1 // pred_check_branch
      %30 = sbr.rel (0) target = $region21
    $region20: #{tpu_custom_call.1} parent=1 // pred_region
      _
    $region21: #{tpu_custom_call.1} parent=1 // pred_fallthru
      _
    // Predicated region
    $region22: #{tpu_custom_call.1} parent=1 // pred_check
      _
    $region23: #{tpu_custom_call.1} parent=1 // pred_check_branch
      %32 = sbr.rel (0) target = $region25
    $region24: #{tpu_custom_call.1} parent=1 // pred_region
      _
    $region25: #{tpu_custom_call.1} parent=1 // pred_fallthru
      _
    // Predicated region
    $region26: #{tpu_custom_call.1} parent=1 // pred_check
      _
    $region27: #{tpu_custom_call.1} parent=1 // pred_check_branch
      %34 = sbr.rel (0) target = $region29
    $region28: #{tpu_custom_call.1} parent=1 // pred_region
      _
    $region29: #{tpu_custom_call.1} parent=1 // pred_fallthru
      _
    // Predicated region
    $region30: #{tpu_custom_call.1} parent=1 // pred_check
      _
    $region31: #{tpu_custom_call.1} parent=1 // pred_check_branch
      %36 = sbr.rel (0) target = $region33
    $region32: #{tpu_custom_call.1} parent=1 // pred_region
      _
    $region33: #{tpu_custom_call.1} parent=1 // pred_fallthru
      _
    // Predicated region
    $region34: #{tpu_custom_call.1} parent=1 // pred_check
      _
    $region35: #{tpu_custom_call.1} parent=1 // pred_check_branch
      %38 = sbr.rel (0) target = $region37
    $region36: #{tpu_custom_call.1} parent=1 // pred_region
      _
    $region37: #{tpu_custom_call.1} parent=1 // pred_fallthru
      _
    // Predicated region
    $region38: #{tpu_custom_call.1} parent=1 // pred_check
      _
    $region39: #{tpu_custom_call.1} parent=1 // pred_check_branch
      %40 = sbr.rel (0) target = $region41
    $region40: #{tpu_custom_call.1} parent=1 // pred_region
      _
    $region41: #{tpu_custom_call.1} parent=1 // pred_fallthru
      _
    // Predicated region
    $region42: #{tpu_custom_call.1} parent=1 // pred_check
      _
    $region43: #{tpu_custom_call.1} parent=1 // pred_check_branch
      %42 = sbr.rel (0) target = $region45
    $region44: #{tpu_custom_call.1} parent=1 // pred_region
      _
    $region45: #{tpu_custom_call.1} parent=1 // pred_fallthru
      _
    // Predicated region
    $region46: #{tpu_custom_call.1} parent=1 // pred_check
      _
    $region47: #{tpu_custom_call.1} parent=1 // pred_check_branch
      %44 = sbr.rel (0) target = $region49
    $region48: #{tpu_custom_call.1} parent=1 // pred_region
      _
    $region49: #{tpu_custom_call.1} parent=1 // pred_fallthru
      _
    // Predicated region
    $region50: #{tpu_custom_call.1} parent=1 // pred_check
      _
    $region51: #{tpu_custom_call.1} parent=1 // pred_check_branch
      %46 = sbr.rel (0) target = $region53
    $region52: #{tpu_custom_call.1} parent=1 // pred_region
      _
    $region53: #{tpu_custom_call.1} parent=1 // pred_fallthru
      _
    // Predicated region
    $region54: #{tpu_custom_call.1} parent=1 // pred_check
      _
    $region55: #{tpu_custom_call.1} parent=1 // pred_check_branch
      %48 = sbr.rel (0) target = $region57
    $region56: #{tpu_custom_call.1} parent=1 // pred_region
      _
    $region57: #{tpu_custom_call.1} parent=1 // pred_fallthru
      _
    // Predicated region
    $region58: #{tpu_custom_call.1} parent=1 // pred_check
      _
    $region59: #{tpu_custom_call.1} parent=1 // pred_check_branch
      %50 = sbr.rel (0) target = $region61
    $region60: #{tpu_custom_call.1} parent=1 // pred_region
      _
    $region61: #{tpu_custom_call.1} parent=1 // pred_fallthru
      _
    %v51 = vld [vmem:[%s0] sm:$0xff]
    %v52 = vld [vmem:[%s0 + $0x8] sm:$0xff]
    %v53 = vld [vmem:[%s1] sm:$0xff]
    %v54 = vld [vmem:[%s1 + $0x8] sm:$0xff]
    %v55 = vld [vmem:[%s1 + $0x10] sm:$0xff]
    %v56 = vld [vmem:[%s1 + $0x18] sm:$0xff]
    %v57 = vld [vmem:[%s4] sm:$0x1]
    %v59 = vlaneseq
    %v60 = vshrl.u32 %v59, 7
    %v61 = vsub.s32 0, %v60
    %v62 = vrot.slane %v57, %v61
    %vm64 = vcmask 261120
    %v66 = vsel %vm64, %v51, 0
    %v69 = vsel %vm64, %v52, 0
    %71 = vmatprep.subr.mxu0 0.0
    %72 = vmatpush1.msra.mxu0 %v53
    %73 = vmatprep.subr.mxu0 0.0
    %74 = vmatpush1.msra.mxu0 %v54
    %75 = vmatprep.subr.mxu0 0.0
    %76 = vmatpush1.msra.mxu0 %v55
    %77 = vmatprep.subr.mxu0 0.0
    %78 = vmatpush1.msra.mxu0 %v56
    %79 = vmatprep.subr.mxu0 0.0
    %80 = vmatpush1.msra.mxu0 0.0
    %81 = vmatprep.subr.mxu0 0.0
    %82 = vmatpush1.msra.mxu0 0.0
    %83 = vmatprep.subr.mxu0 0.0
    %84 = vmatpush1.msra.mxu0 0.0
    %85 = vmatprep.subr.mxu0 0.0
    %86 = vmatpush1.msra.mxu0 0.0
    %87 = vmatprep.subr.mxu0 0.0
    %88 = vmatpush1.msra.mxu0 0.0
    %89 = vmatprep.subr.mxu0 0.0
    %90 = vmatpush1.msra.mxu0 0.0
    %91 = vmatprep.subr.mxu0 0.0
    %92 = vmatpush1.msra.mxu0 0.0
    %93 = vmatprep.subr.mxu0 0.0
    %94 = vmatpush1.msra.mxu0 0.0
    %95 = vmatprep.subr.mxu0 0.0
    %96 = vmatpush1.msra.mxu0 0.0
    %97 = vmatprep.subr.mxu0 0.0
    %98 = vmatpush1.msra.mxu0 0.0
    %99 = vmatprep.subr.mxu0 0.0
    %100 = vmatpush1.msra.mxu0 0.0
    %101 = vmatprep.subr.mxu0 0.0
    %102 = vmatpush1.msra.mxu0 0.0
    %103 = vmatprep.subr.mxu0 0.0
    %104 = vmatpush1.msra.mxu0 0.0
    %105 = vmatprep.subr.mxu0 0.0
    %106 = vmatpush1.msra.mxu0 0.0
    %107 = vmatprep.subr.mxu0 0.0
    %108 = vmatpush1.msra.mxu0 0.0
    %109 = vmatprep.subr.mxu0 0.0
    %110 = vmatpush1.msra.mxu0 0.0
    %111 = vmatprep.subr.mxu0 0.0
    %112 = vmatpush1.msra.mxu0 0.0
    %113 = vmatprep.subr.mxu0 0.0
    %114 = vmatpush1.msra.mxu0 0.0
    %115 = vmatprep.subr.mxu0 0.0
    %116 = vmatpush1.msra.mxu0 0.0
    %117 = vmatprep.subr.mxu0 0.0
    %118 = vmatpush1.msra.mxu0 0.0
    %119 = vmatprep.subr.mxu0 0.0
    %120 = vmatpush1.msra.mxu0 0.0
    %121 = vmatprep.subr.mxu0 0.0
    %122 = vmatpush1.msra.mxu0 0.0
    %123 = vmatprep.subr.mxu0 0.0
    %124 = vmatpush1.msra.mxu0 0.0
    %125 = vmatprep.subr.mxu0 0.0
    %126 = vmatpush1.msra.mxu0 0.0
    %127 = vmatprep.subr.mxu0 0.0
    %128 = vmatpush1.msra.mxu0 0.0
    %129 = vmatprep.subr.mxu0 0.0
    %130 = vmatpush1.msra.mxu0 0.0
    %131 = vmatprep.subr.mxu0 0.0
    %132 = vmatpush1.msra.mxu0 0.0
    %133 = vmatprep.subr.mxu0 0.0
    %134 = vmatpush1.msra.mxu0 0.0
    %135 = vmatprep.mubr.f32.mxu0 0.0
    %136 = vmatmul.mubr.f32.gmra.mrb[0].mxu0 %v66
    %v137 = vpop.f32.mrb[0].mxu0
    %v138 = vadd.f32 %v62, %v137
    %v139 = vpop.f32.mrb[0].mxu0
    %140 = vmatprep.mubr.f32.mxu0 0.0
    %141 = vmatmul.mubr.f32.gmra.mrb[0].mxu0 %v69
    %v142 = vpop.f32.mrb[0].mxu0
    %v143 = vadd.f32 %v62, %v142
    %v144 = vpop.f32.mrb[0].mxu0
    %145 = vdwg.mxu0
    %v146 = vld [vmem:[%s2] sm:$0xff]
    %v147 = vld [vmem:[%s2 + $0x8] sm:$0xff]
    %v148 = vld [vmem:[%s2 + $0x10] sm:$0xff]
    %v149 = vld [vmem:[%s2 + $0x18] sm:$0xff]
    %v150 = vld [vmem:[%s5] sm:$0x1]
    %v152 = vlaneseq
    %v153 = vshrl.u32 %v152, 7
    %v154 = vsub.s32 0, %v153
    %v155 = vrot.slane %v150, %v154
    %157 = vmatprep.subr.mxu0 0.0
    %158 = vmatpush1.msra.mxu0 %v146
    %159 = vmatprep.subr.mxu0 0.0
    %160 = vmatpush1.msra.mxu0 %v147
    %161 = vmatprep.subr.mxu0 0.0
    %162 = vmatpush1.msra.mxu0 %v148
    %163 = vmatprep.subr.mxu0 0.0
    %164 = vmatpush1.msra.mxu0 %v149
    %165 = vmatprep.subr.mxu0 0.0
    %166 = vmatpush1.msra.mxu0 0.0
    %167 = vmatprep.subr.mxu0 0.0
    %168 = vmatpush1.msra.mxu0 0.0
    %169 = vmatprep.subr.mxu0 0.0
    %170 = vmatpush1.msra.mxu0 0.0
    %171 = vmatprep.subr.mxu0 0.0
    %172 = vmatpush1.msra.mxu0 0.0
    %173 = vmatprep.subr.mxu0 0.0
    %174 = vmatpush1.msra.mxu0 0.0
    %175 = vmatprep.subr.mxu0 0.0
    %176 = vmatpush1.msra.mxu0 0.0
    %177 = vmatprep.subr.mxu0 0.0
    %178 = vmatpush1.msra.mxu0 0.0
    %179 = vmatprep.subr.mxu0 0.0
    %180 = vmatpush1.msra.mxu0 0.0
    %181 = vmatprep.subr.mxu0 0.0
    %182 = vmatpush1.msra.mxu0 0.0
    %183 = vmatprep.subr.mxu0 0.0
    %184 = vmatpush1.msra.mxu0 0.0
    %185 = vmatprep.subr.mxu0 0.0
    %186 = vmatpush1.msra.mxu0 0.0
    %187 = vmatprep.subr.mxu0 0.0
    %188 = vmatpush1.msra.mxu0 0.0
    %189 = vmatprep.subr.mxu0 0.0
    %190 = vmatpush1.msra.mxu0 0.0
    %191 = vmatprep.subr.mxu0 0.0
    %192 = vmatpush1.msra.mxu0 0.0
    %193 = vmatprep.subr.mxu0 0.0
    %194 = vmatpush1.msra.mxu0 0.0
    %195 = vmatprep.subr.mxu0 0.0
    %196 = vmatpush1.msra.mxu0 0.0
    %197 = vmatprep.subr.mxu0 0.0
    %198 = vmatpush1.msra.mxu0 0.0
    %199 = vmatprep.subr.mxu0 0.0
    %200 = vmatpush1.msra.mxu0 0.0
    %201 = vmatprep.subr.mxu0 0.0
    %202 = vmatpush1.msra.mxu0 0.0
    %203 = vmatprep.subr.mxu0 0.0
    %204 = vmatpush1.msra.mxu0 0.0
    %205 = vmatprep.subr.mxu0 0.0
    %206 = vmatpush1.msra.mxu0 0.0
    %207 = vmatprep.subr.mxu0 0.0
    %208 = vmatpush1.msra.mxu0 0.0
    %209 = vmatprep.subr.mxu0 0.0
    %210 = vmatpush1.msra.mxu0 0.0
    %211 = vmatprep.subr.mxu0 0.0
    %212 = vmatpush1.msra.mxu0 0.0
    %213 = vmatprep.subr.mxu0 0.0
    %214 = vmatpush1.msra.mxu0 0.0
    %215 = vmatprep.subr.mxu0 0.0
    %216 = vmatpush1.msra.mxu0 0.0
    %217 = vmatprep.subr.mxu0 0.0
    %218 = vmatpush1.msra.mxu0 0.0
    %219 = vmatprep.subr.mxu0 0.0
    %220 = vmatpush1.msra.mxu0 0.0
    %221 = vmatprep.mubr.f32.mxu0 0.0
    %222 = vmatmul.mubr.f32.gmra.mrb[0].mxu0 %v66
    %v223 = vpop.f32.mrb[0].mxu0
    %v224 = vadd.f32 %v155, %v223
    %v225 = vpop.f32.mrb[0].mxu0
    %226 = vmatprep.mubr.f32.mxu0 0.0
    %227 = vmatmul.mubr.f32.gmra.mrb[0].mxu0 %v69
    %v228 = vpop.f32.mrb[0].mxu0
    %v229 = vadd.f32 %v155, %v228
    %v230 = vpop.f32.mrb[0].mxu0
    %231 = vdwg.mxu0
    %v232 = vld [vmem:[%s3] sm:$0xff]
    %v233 = vld [vmem:[%s3 + $0x8] sm:$0xff]
    %v234 = vld [vmem:[%s3 + $0x10] sm:$0xff]
    %v235 = vld [vmem:[%s3 + $0x18] sm:$0xff]
    %v236 = vld [vmem:[%s6] sm:$0x1]
    %v238 = vlaneseq
    %v239 = vshrl.u32 %v238, 7
    %v240 = vsub.s32 0, %v239
    %v241 = vrot.slane %v236, %v240
    %243 = vmatprep.subr.mxu0 0.0
    %244 = vmatpush1.msra.mxu0 %v232
    %245 = vmatprep.subr.mxu0 0.0
    %246 = vmatpush1.msra.mxu0 %v233
    %247 = vmatprep.subr.mxu0 0.0
    %248 = vmatpush1.msra.mxu0 %v234
    %249 = vmatprep.subr.mxu0 0.0
    %250 = vmatpush1.msra.mxu0 %v235
    %251 = vmatprep.subr.mxu0 0.0
    %252 = vmatpush1.msra.mxu0 0.0
    %253 = vmatprep.subr.mxu0 0.0
    %254 = vmatpush1.msra.mxu0 0.0
    %255 = vmatprep.subr.mxu0 0.0
    %256 = vmatpush1.msra.mxu0 0.0
    %257 = vmatprep.subr.mxu0 0.0
    %258 = vmatpush1.msra.mxu0 0.0
    %259 = vmatprep.subr.mxu0 0.0
    %260 = vmatpush1.msra.mxu0 0.0
    %261 = vmatprep.subr.mxu0 0.0
    %262 = vmatpush1.msra.mxu0 0.0
    %263 = vmatprep.subr.mxu0 0.0
    %264 = vmatpush1.msra.mxu0 0.0
    %265 = vmatprep.subr.mxu0 0.0
    %266 = vmatpush1.msra.mxu0 0.0
    %267 = vmatprep.subr.mxu0 0.0
    %268 = vmatpush1.msra.mxu0 0.0
    %269 = vmatprep.subr.mxu0 0.0
    %270 = vmatpush1.msra.mxu0 0.0
    %271 = vmatprep.subr.mxu0 0.0
    %272 = vmatpush1.msra.mxu0 0.0
    %273 = vmatprep.subr.mxu0 0.0
    %274 = vmatpush1.msra.mxu0 0.0
    %275 = vmatprep.subr.mxu0 0.0
    %276 = vmatpush1.msra.mxu0 0.0
    %277 = vmatprep.subr.mxu0 0.0
    %278 = vmatpush1.msra.mxu0 0.0
    %279 = vmatprep.subr.mxu0 0.0
    %280 = vmatpush1.msra.mxu0 0.0
    %281 = vmatprep.subr.mxu0 0.0
    %282 = vmatpush1.msra.mxu0 0.0
    %283 = vmatprep.subr.mxu0 0.0
    %284 = vmatpush1.msra.mxu0 0.0
    %285 = vmatprep.subr.mxu0 0.0
    %286 = vmatpush1.msra.mxu0 0.0
    %287 = vmatprep.subr.mxu0 0.0
    %288 = vmatpush1.msra.mxu0 0.0
    %289 = vmatprep.subr.mxu0 0.0
    %290 = vmatpush1.msra.mxu0 0.0
    %291 = vmatprep.subr.mxu0 0.0
    %292 = vmatpush1.msra.mxu0 0.0
    %293 = vmatprep.subr.mxu0 0.0
    %294 = vmatpush1.msra.mxu0 0.0
    %295 = vmatprep.subr.mxu0 0.0
    %296 = vmatpush1.msra.mxu0 0.0
    %297 = vmatprep.subr.mxu0 0.0
    %298 = vmatpush1.msra.mxu0 0.0
    %299 = vmatprep.subr.mxu0 0.0
    %300 = vmatpush1.msra.mxu0 0.0
    %301 = vmatprep.subr.mxu0 0.0
    %302 = vmatpush1.msra.mxu0 0.0
    %303 = vmatprep.subr.mxu0 0.0
    %304 = vmatpush1.msra.mxu0 0.0
    %305 = vmatprep.subr.mxu0 0.0
    %306 = vmatpush1.msra.mxu0 0.0
    %307 = vmatprep.mubr.f32.mxu0 0.0
    %308 = vmatmul.mubr.f32.gmra.mrb[0].mxu0 %v66
    %v309 = vpop.f32.mrb[0].mxu0
    %v310 = vadd.f32 %v241, %v309
    %v311 = vpop.f32.mrb[0].mxu0
    %312 = vmatprep.mubr.f32.mxu0 0.0
    %313 = vmatmul.mubr.f32.gmra.mrb[0].mxu0 %v69
    %v314 = vpop.f32.mrb[0].mxu0
    %v315 = vadd.f32 %v241, %v314
    %v316 = vpop.f32.mrb[0].mxu0
    %317 = vdwg.mxu0
    %v318 = vld [vmem:[%s7] sm:$0xff]
    %v319 = vld [vmem:[%s7 + $0x8] sm:$0xff]
    %v320 = vld [vmem:[%s8] sm:$0xff]
    %v321 = vld [vmem:[%s8 + $0x8] sm:$0xff]
    %v322 = vld [vmem:[%s9] sm:$0xff]
    %v323 = vld [vmem:[%s9 + $0x8] sm:$0xff]
    %v324 = vld [vmem:[%s10] sm:$0x1]
    %v325 = vld [vmem:[%s11] sm:$0x1]
    %v326 = vld [vmem:[%s12] sm:$0x1]
    %v328 = vlaneseq
    %v329 = vshrl.u32 %v328, 7
    %v330 = vsub.s32 0, %v329
    %v331 = vrot.slane %v324, %v330
    %vm333 = vcmask 130048
    %v335 = vsel %vm333, 0.0, 0
    %337 = vmatprep.subr.mxu0 0.0
    %338 = vmatpush1.msra.mxu0 %v318
    %339 = vmatprep.subr.mxu0 0.0
    %340 = vmatpush1.msra.mxu0 %v319
    %341 = vmatprep.subr.mxu0 0.0
    %342 = vmatpush1.msra.mxu0 0.0
    %343 = vmatprep.subr.mxu0 0.0
    %344 = vmatpush1.msra.mxu0 0.0
    %345 = vmatprep.subr.mxu0 0.0
    %346 = vmatpush1.msra.mxu0 0.0
    %347 = vmatprep.subr.mxu0 0.0
    %348 = vmatpush1.msra.mxu0 0.0
    %349 = vmatprep.subr.mxu0 0.0
    %350 = vmatpush1.msra.mxu0 0.0
    %351 = vmatprep.subr.mxu0 0.0
    %352 = vmatpush1.msra.mxu0 0.0
    %353 = vmatprep.subr.mxu0 0.0
    %354 = vmatpush1.msra.mxu0 0.0
    %355 = vmatprep.subr.mxu0 0.0
    %356 = vmatpush1.msra.mxu0 0.0
    %357 = vmatprep.subr.mxu0 0.0
    %358 = vmatpush1.msra.mxu0 0.0
    %359 = vmatprep.subr.mxu0 0.0
    %360 = vmatpush1.msra.mxu0 0.0
    %361 = vmatprep.subr.mxu0 0.0
    %362 = vmatpush1.msra.mxu0 0.0
    %363 = vmatprep.subr.mxu0 0.0
    %364 = vmatpush1.msra.mxu0 0.0
    %365 = vmatprep.subr.mxu0 0.0
    %366 = vmatpush1.msra.mxu0 0.0
    %367 = vmatprep.subr.mxu0 0.0
    %368 = vmatpush1.msra.mxu0 0.0
    %369 = vmatprep.subr.mxu0 0.0
    %370 = vmatpush1.msra.mxu0 0.0
    %371 = vmatprep.subr.mxu0 0.0
    %372 = vmatpush1.msra.mxu0 0.0
    %373 = vmatprep.subr.mxu0 0.0
    %374 = vmatpush1.msra.mxu0 0.0
    %375 = vmatprep.subr.mxu0 0.0
    %376 = vmatpush1.msra.mxu0 0.0
    %377 = vmatprep.subr.mxu0 0.0
    %378 = vmatpush1.msra.mxu0 0.0
    %379 = vmatprep.subr.mxu0 0.0
    %380 = vmatpush1.msra.mxu0 0.0
    %381 = vmatprep.subr.mxu0 0.0
    %382 = vmatpush1.msra.mxu0 0.0
    %383 = vmatprep.subr.mxu0 0.0
    %384 = vmatpush1.msra.mxu0 0.0
    %385 = vmatprep.subr.mxu0 0.0
    %386 = vmatpush1.msra.mxu0 0.0
    %387 = vmatprep.subr.mxu0 0.0
    %388 = vmatpush1.msra.mxu0 0.0
    %389 = vmatprep.subr.mxu0 0.0
    %390 = vmatpush1.msra.mxu0 0.0
    %391 = vmatprep.subr.mxu0 0.0
    %392 = vmatpush1.msra.mxu0 0.0
    %393 = vmatprep.subr.mxu0 0.0
    %394 = vmatpush1.msra.mxu0 0.0
    %395 = vmatprep.subr.mxu0 0.0
    %396 = vmatpush1.msra.mxu0 0.0
    %397 = vmatprep.subr.mxu0 0.0
    %398 = vmatpush1.msra.mxu0 0.0
    %399 = vmatprep.subr.mxu0 0.0
    %400 = vmatpush1.msra.mxu0 0.0
    %401 = vmatprep.mubr.f32.mxu0 0.0
    %402 = vmatmul.mubr.f32.gmra.mrb[0].mxu0 %v335
    %v403 = vpop.f32.mrb[0].mxu0
    %v404 = vadd.f32 %v331, %v403
    %v405 = vpop.f32.mrb[0].mxu0
    %406 = vdwg.mxu0
    %v408 = vlaneseq
    %v409 = vshrl.u32 %v408, 7
    %v410 = vsub.s32 0, %v409
    %v411 = vrot.slane %v325, %v410
    %413 = vmatprep.subr.mxu0 0.0
    %414 = vmatpush1.msra.mxu0 %v320
    %415 = vmatprep.subr.mxu0 0.0
    %416 = vmatpush1.msra.mxu0 %v321
    %417 = vmatprep.subr.mxu0 0.0
    %418 = vmatpush1.msra.mxu0 0.0
    %419 = vmatprep.subr.mxu0 0.0
    %420 = vmatpush1.msra.mxu0 0.0
    %421 = vmatprep.subr.mxu0 0.0
    %422 = vmatpush1.msra.mxu0 0.0
    %423 = vmatprep.subr.mxu0 0.0
    %424 = vmatpush1.msra.mxu0 0.0
    %425 = vmatprep.subr.mxu0 0.0
    %426 = vmatpush1.msra.mxu0 0.0
    %427 = vmatprep.subr.mxu0 0.0
    %428 = vmatpush1.msra.mxu0 0.0
    %429 = vmatprep.subr.mxu0 0.0
    %430 = vmatpush1.msra.mxu0 0.0
    %431 = vmatprep.subr.mxu0 0.0
    %432 = vmatpush1.msra.mxu0 0.0
    %433 = vmatprep.subr.mxu0 0.0
    %434 = vmatpush1.msra.mxu0 0.0
    %435 = vmatprep.subr.mxu0 0.0
    %436 = vmatpush1.msra.mxu0 0.0
    %437 = vmatprep.subr.mxu0 0.0
    %438 = vmatpush1.msra.mxu0 0.0
    %439 = vmatprep.subr.mxu0 0.0
    %440 = vmatpush1.msra.mxu0 0.0
    %441 = vmatprep.subr.mxu0 0.0
    %442 = vmatpush1.msra.mxu0 0.0
    %443 = vmatprep.subr.mxu0 0.0
    %444 = vmatpush1.msra.mxu0 0.0
    %445 = vmatprep.subr.mxu0 0.0
    %446 = vmatpush1.msra.mxu0 0.0
    %447 = vmatprep.subr.mxu0 0.0
    %448 = vmatpush1.msra.mxu0 0.0
    %449 = vmatprep.subr.mxu0 0.0
    %450 = vmatpush1.msra.mxu0 0.0
    %451 = vmatprep.subr.mxu0 0.0
    %452 = vmatpush1.msra.mxu0 0.0
    %453 = vmatprep.subr.mxu0 0.0
    %454 = vmatpush1.msra.mxu0 0.0
    %455 = vmatprep.subr.mxu0 0.0
    %456 = vmatpush1.msra.mxu0 0.0
    %457 = vmatprep.subr.mxu0 0.0
    %458 = vmatpush1.msra.mxu0 0.0
    %459 = vmatprep.subr.mxu0 0.0
    %460 = vmatpush1.msra.mxu0 0.0
    %461 = vmatprep.subr.mxu0 0.0
    %462 = vmatpush1.msra.mxu0 0.0
    %463 = vmatprep.subr.mxu0 0.0
    %464 = vmatpush1.msra.mxu0 0.0
    %465 = vmatprep.subr.mxu0 0.0
    %466 = vmatpush1.msra.mxu0 0.0
    %467 = vmatprep.subr.mxu0 0.0
    %468 = vmatpush1.msra.mxu0 0.0
    %469 = vmatprep.subr.mxu0 0.0
    %470 = vmatpush1.msra.mxu0 0.0
    %471 = vmatprep.subr.mxu0 0.0
    %472 = vmatpush1.msra.mxu0 0.0
    %473 = vmatprep.subr.mxu0 0.0
    %474 = vmatpush1.msra.mxu0 0.0
    %475 = vmatprep.subr.mxu0 0.0
    %476 = vmatpush1.msra.mxu0 0.0
    %477 = vmatprep.mubr.f32.mxu0 0.0
    %478 = vmatmul.mubr.f32.gmra.mrb[0].mxu0 %v335
    %v479 = vpop.f32.mrb[0].mxu0
    %v480 = vadd.f32 %v411, %v479
    %v481 = vpop.f32.mrb[0].mxu0
    %482 = vdwg.mxu0
    %v484 = vlaneseq
    %v485 = vshrl.u32 %v484, 7
    %v486 = vsub.s32 0, %v485
    %v487 = vrot.slane %v326, %v486
    %489 = vmatprep.subr.mxu0 0.0
    %490 = vmatpush1.msra.mxu0 %v322
    %491 = vmatprep.subr.mxu0 0.0
    %492 = vmatpush1.msra.mxu0 %v323
    %493 = vmatprep.subr.mxu0 0.0
    %494 = vmatpush1.msra.mxu0 0.0
    %495 = vmatprep.subr.mxu0 0.0
    %496 = vmatpush1.msra.mxu0 0.0
    %497 = vmatprep.subr.mxu0 0.0
    %498 = vmatpush1.msra.mxu0 0.0
    %499 = vmatprep.subr.mxu0 0.0
    %500 = vmatpush1.msra.mxu0 0.0
    %501 = vmatprep.subr.mxu0 0.0
    %502 = vmatpush1.msra.mxu0 0.0
    %503 = vmatprep.subr.mxu0 0.0
    %504 = vmatpush1.msra.mxu0 0.0
    %505 = vmatprep.subr.mxu0 0.0
    %506 = vmatpush1.msra.mxu0 0.0
    %507 = vmatprep.subr.mxu0 0.0
    %508 = vmatpush1.msra.mxu0 0.0
    %509 = vmatprep.subr.mxu0 0.0
    %510 = vmatpush1.msra.mxu0 0.0
    %511 = vmatprep.subr.mxu0 0.0
    %512 = vmatpush1.msra.mxu0 0.0
    %513 = vmatprep.subr.mxu0 0.0
    %514 = vmatpush1.msra.mxu0 0.0
    %515 = vmatprep.subr.mxu0 0.0
    %516 = vmatpush1.msra.mxu0 0.0
    %517 = vmatprep.subr.mxu0 0.0
    %518 = vmatpush1.msra.mxu0 0.0
    %519 = vmatprep.subr.mxu0 0.0
    %520 = vmatpush1.msra.mxu0 0.0
    %521 = vmatprep.subr.mxu0 0.0
    %522 = vmatpush1.msra.mxu0 0.0
    %523 = vmatprep.subr.mxu0 0.0
    %524 = vmatpush1.msra.mxu0 0.0
    %525 = vmatprep.subr.mxu0 0.0
    %526 = vmatpush1.msra.mxu0 0.0
    %527 = vmatprep.subr.mxu0 0.0
    %528 = vmatpush1.msra.mxu0 0.0
    %529 = vmatprep.subr.mxu0 0.0
    %530 = vmatpush1.msra.mxu0 0.0
    %531 = vmatprep.subr.mxu0 0.0
    %532 = vmatpush1.msra.mxu0 0.0
    %533 = vmatprep.subr.mxu0 0.0
    %534 = vmatpush1.msra.mxu0 0.0
    %535 = vmatprep.subr.mxu0 0.0
    %536 = vmatpush1.msra.mxu0 0.0
    %537 = vmatprep.subr.mxu0 0.0
    %538 = vmatpush1.msra.mxu0 0.0
    %539 = vmatprep.subr.mxu0 0.0
    %540 = vmatpush1.msra.mxu0 0.0
    %541 = vmatprep.subr.mxu0 0.0
    %542 = vmatpush1.msra.mxu0 0.0
    %543 = vmatprep.subr.mxu0 0.0
    %544 = vmatpush1.msra.mxu0 0.0
    %545 = vmatprep.subr.mxu0 0.0
    %546 = vmatpush1.msra.mxu0 0.0
    %547 = vmatprep.subr.mxu0 0.0
    %548 = vmatpush1.msra.mxu0 0.0
    %549 = vmatprep.subr.mxu0 0.0
    %550 = vmatpush1.msra.mxu0 0.0
    %551 = vmatprep.subr.mxu0 0.0
    %552 = vmatpush1.msra.mxu0 0.0
    %553 = vmatprep.mubr.f32.mxu0 0.0
    %554 = vmatmul.mubr.f32.gmra.mrb[0].mxu0 %v335
    %v555 = vpop.f32.mrb[0].mxu0
    %v556 = vadd.f32 %v487, %v555
    %v557 = vpop.f32.mrb[0].mxu0
    %558 = vdwg.mxu0
    %v559 = vadd.f32 %v138, %v404
    %v560 = vxor.u32 %v559, 2147483648
    %v561 = vmul.f32 %v560, 1.442695
    %v562 = vpow.pop %v561
    %v563 = vadd.f32 %v562, 1.0
    %v564 = vrcp.pop %v563
    %v565 = vmul.f32 1.0, %v564
    %v566 = vadd.f32 %v224, %v480
    %v567 = vxor.u32 %v566, 2147483648
    %v568 = vmul.f32 %v567, 1.442695
    %v569 = vpow.pop %v568
    %v570 = vadd.f32 %v569, 1.0
    %v571 = vrcp.pop %v570
    %v572 = vmul.f32 1.0, %v571
    %v573 = vmul.f32 %v565, %v556
    %v574 = vadd.f32 %v310, %v573
    %v575 = vtanh.pop %v574
    %v576 = vsub.f32 1.0, %v572
    %v577 = vmul.f32 %v576, %v575
    %v578 = vmul.f32 %v572, 0.0
    %v579 = vadd.f32 %v577, %v578
    %v581 = vsel %vm333, %v579, 0
    %583 = vmatprep.subr.mxu0 0.0
    %584 = vmatpush1.msra.mxu0 %v318
    %585 = vmatprep.subr.mxu0 0.0
    %586 = vmatpush1.msra.mxu0 %v319
    %587 = vmatprep.subr.mxu0 0.0
    %588 = vmatpush1.msra.mxu0 0.0
    %589 = vmatprep.subr.mxu0 0.0
    %590 = vmatpush1.msra.mxu0 0.0
    %591 = vmatprep.subr.mxu0 0.0
    %592 = vmatpush1.msra.mxu0 0.0
    %593 = vmatprep.subr.mxu0 0.0
    %594 = vmatpush1.msra.mxu0 0.0
    %595 = vmatprep.subr.mxu0 0.0
    %596 = vmatpush1.msra.mxu0 0.0
    %597 = vmatprep.subr.mxu0 0.0
    %598 = vmatpush1.msra.mxu0 0.0
    %599 = vmatprep.subr.mxu0 0.0
    %600 = vmatpush1.msra.mxu0 0.0
    %601 = vmatprep.subr.mxu0 0.0
    %602 = vmatpush1.msra.mxu0 0.0
    %603 = vmatprep.subr.mxu0 0.0
    %604 = vmatpush1.msra.mxu0 0.0
    %605 = vmatprep.subr.mxu0 0.0
    %606 = vmatpush1.msra.mxu0 0.0
    %607 = vmatprep.subr.mxu0 0.0
    %608 = vmatpush1.msra.mxu0 0.0
    %609 = vmatprep.subr.mxu0 0.0
    %610 = vmatpush1.msra.mxu0 0.0
    %611 = vmatprep.subr.mxu0 0.0
    %612 = vmatpush1.msra.mxu0 0.0
    %613 = vmatprep.subr.mxu0 0.0
    %614 = vmatpush1.msra.mxu0 0.0
    %615 = vmatprep.subr.mxu0 0.0
    %616 = vmatpush1.msra.mxu0 0.0
    %617 = vmatprep.subr.mxu0 0.0
    %618 = vmatpush1.msra.mxu0 0.0
    %619 = vmatprep.subr.mxu0 0.0
    %620 = vmatpush1.msra.mxu0 0.0
    %621 = vmatprep.subr.mxu0 0.0
    %622 = vmatpush1.msra.mxu0 0.0
    %623 = vmatprep.subr.mxu0 0.0
    %624 = vmatpush1.msra.mxu0 0.0
    %625 = vmatprep.subr.mxu0 0.0
    %626 = vmatpush1.msra.mxu0 0.0
    %627 = vmatprep.subr.mxu0 0.0
    %628 = vmatpush1.msra.mxu0 0.0
    %629 = vmatprep.subr.mxu0 0.0
    %630 = vmatpush1.msra.mxu0 0.0
    %631 = vmatprep.subr.mxu0 0.0
    %632 = vmatpush1.msra.mxu0 0.0
    %633 = vmatprep.subr.mxu0 0.0
    %634 = vmatpush1.msra.mxu0 0.0
    %635 = vmatprep.subr.mxu0 0.0
    %636 = vmatpush1.msra.mxu0 0.0
    %637 = vmatprep.subr.mxu0 0.0
    %638 = vmatpush1.msra.mxu0 0.0
    %639 = vmatprep.subr.mxu0 0.0
    %640 = vmatpush1.msra.mxu0 0.0
    %641 = vmatprep.subr.mxu0 0.0
    %642 = vmatpush1.msra.mxu0 0.0
    %643 = vmatprep.subr.mxu0 0.0
    %644 = vmatpush1.msra.mxu0 0.0
    %645 = vmatprep.subr.mxu0 0.0
    %646 = vmatpush1.msra.mxu0 0.0
    %647 = vmatprep.mubr.f32.mxu0 0.0
    %648 = vmatmul.mubr.f32.gmra.mrb[0].mxu0 %v581
    %v649 = vpop.f32.mrb[0].mxu0
    %v650 = vadd.f32 %v331, %v649
    %v651 = vpop.f32.mrb[0].mxu0
    %652 = vdwg.mxu0
    %653 = vmatprep.subr.mxu0 0.0
    %654 = vmatpush1.msra.mxu0 %v320
    %655 = vmatprep.subr.mxu0 0.0
    %656 = vmatpush1.msra.mxu0 %v321
    %657 = vmatprep.subr.mxu0 0.0
    %658 = vmatpush1.msra.mxu0 0.0
    %659 = vmatprep.subr.mxu0 0.0
    %660 = vmatpush1.msra.mxu0 0.0
    %661 = vmatprep.subr.mxu0 0.0
    %662 = vmatpush1.msra.mxu0 0.0
    %663 = vmatprep.subr.mxu0 0.0
    %664 = vmatpush1.msra.mxu0 0.0
    %665 = vmatprep.subr.mxu0 0.0
    %666 = vmatpush1.msra.mxu0 0.0
    %667 = vmatprep.subr.mxu0 0.0
    %668 = vmatpush1.msra.mxu0 0.0
    %669 = vmatprep.subr.mxu0 0.0
    %670 = vmatpush1.msra.mxu0 0.0
    %671 = vmatprep.subr.mxu0 0.0
    %672 = vmatpush1.msra.mxu0 0.0
    %673 = vmatprep.subr.mxu0 0.0
    %674 = vmatpush1.msra.mxu0 0.0
    %675 = vmatprep.subr.mxu0 0.0
    %676 = vmatpush1.msra.mxu0 0.0
    %677 = vmatprep.subr.mxu0 0.0
    %678 = vmatpush1.msra.mxu0 0.0
    %679 = vmatprep.subr.mxu0 0.0
    %680 = vmatpush1.msra.mxu0 0.0
    %681 = vmatprep.subr.mxu0 0.0
    %682 = vmatpush1.msra.mxu0 0.0
    %683 = vmatprep.subr.mxu0 0.0
    %684 = vmatpush1.msra.mxu0 0.0
    %685 = vmatprep.subr.mxu0 0.0
    %686 = vmatpush1.msra.mxu0 0.0
    %687 = vmatprep.subr.mxu0 0.0
    %688 = vmatpush1.msra.mxu0 0.0
    %689 = vmatprep.subr.mxu0 0.0
    %690 = vmatpush1.msra.mxu0 0.0
    %691 = vmatprep.subr.mxu0 0.0
    %692 = vmatpush1.msra.mxu0 0.0
    %693 = vmatprep.subr.mxu0 0.0
    %694 = vmatpush1.msra.mxu0 0.0
    %695 = vmatprep.subr.mxu0 0.0
    %696 = vmatpush1.msra.mxu0 0.0
    %697 = vmatprep.subr.mxu0 0.0
    %698 = vmatpush1.msra.mxu0 0.0
    %699 = vmatprep.subr.mxu0 0.0
    %700 = vmatpush1.msra.mxu0 0.0
    %701 = vmatprep.subr.mxu0 0.0
    %702 = vmatpush1.msra.mxu0 0.0
    %703 = vmatprep.subr.mxu0 0.0
    %704 = vmatpush1.msra.mxu0 0.0
    %705 = vmatprep.subr.mxu0 0.0
    %706 = vmatpush1.msra.mxu0 0.0
    %707 = vmatprep.subr.mxu0 0.0
    %708 = vmatpush1.msra.mxu0 0.0
    %709 = vmatprep.subr.mxu0 0.0
    %710 = vmatpush1.msra.mxu0 0.0
    %711 = vmatprep.subr.mxu0 0.0
    %712 = vmatpush1.msra.mxu0 0.0
    %713 = vmatprep.subr.mxu0 0.0
    %714 = vmatpush1.msra.mxu0 0.0
    %715 = vmatprep.subr.mxu0 0.0
    %716 = vmatpush1.msra.mxu0 0.0
    %717 = vmatprep.mubr.f32.mxu0 0.0
    %718 = vmatmul.mubr.f32.gmra.mrb[0].mxu0 %v581
    %v719 = vpop.f32.mrb[0].mxu0
    %v720 = vadd.f32 %v411, %v719
    %v721 = vpop.f32.mrb[0].mxu0
    %722 = vdwg.mxu0
    %723 = vmatprep.subr.mxu0 0.0
    %724 = vmatpush1.msra.mxu0 %v322
    %725 = vmatprep.subr.mxu0 0.0
    %726 = vmatpush1.msra.mxu0 %v323
    %727 = vmatprep.subr.mxu0 0.0
    %728 = vmatpush1.msra.mxu0 0.0
    %729 = vmatprep.subr.mxu0 0.0
    %730 = vmatpush1.msra.mxu0 0.0
    %731 = vmatprep.subr.mxu0 0.0
    %732 = vmatpush1.msra.mxu0 0.0
    %733 = vmatprep.subr.mxu0 0.0
    %734 = vmatpush1.msra.mxu0 0.0
    %735 = vmatprep.subr.mxu0 0.0
    %736 = vmatpush1.msra.mxu0 0.0
    %737 = vmatprep.subr.mxu0 0.0
    %738 = vmatpush1.msra.mxu0 0.0
    %739 = vmatprep.subr.mxu0 0.0
    %740 = vmatpush1.msra.mxu0 0.0
    %741 = vmatprep.subr.mxu0 0.0
    %742 = vmatpush1.msra.mxu0 0.0
    %743 = vmatprep.subr.mxu0 0.0
    %744 = vmatpush1.msra.mxu0 0.0
    %745 = vmatprep.subr.mxu0 0.0
    %746 = vmatpush1.msra.mxu0 0.0
    %747 = vmatprep.subr.mxu0 0.0
    %748 = vmatpush1.msra.mxu0 0.0
    %749 = vmatprep.subr.mxu0 0.0
    %750 = vmatpush1.msra.mxu0 0.0
    %751 = vmatprep.subr.mxu0 0.0
    %752 = vmatpush1.msra.mxu0 0.0
    %753 = vmatprep.subr.mxu0 0.0
    %754 = vmatpush1.msra.mxu0 0.0
    %755 = vmatprep.subr.mxu0 0.0
    %756 = vmatpush1.msra.mxu0 0.0
    %757 = vmatprep.subr.mxu0 0.0
    %758 = vmatpush1.msra.mxu0 0.0
    %759 = vmatprep.subr.mxu0 0.0
    %760 = vmatpush1.msra.mxu0 0.0
    %761 = vmatprep.subr.mxu0 0.0
    %762 = vmatpush1.msra.mxu0 0.0
    %763 = vmatprep.subr.mxu0 0.0
    %764 = vmatpush1.msra.mxu0 0.0
    %765 = vmatprep.subr.mxu0 0.0
    %766 = vmatpush1.msra.mxu0 0.0
    %767 = vmatprep.subr.mxu0 0.0
    %768 = vmatpush1.msra.mxu0 0.0
    %769 = vmatprep.subr.mxu0 0.0
    %770 = vmatpush1.msra.mxu0 0.0
    %771 = vmatprep.subr.mxu0 0.0
    %772 = vmatpush1.msra.mxu0 0.0
    %773 = vmatprep.subr.mxu0 0.0
    %774 = vmatpush1.msra.mxu0 0.0
    %775 = vmatprep.subr.mxu0 0.0
    %776 = vmatpush1.msra.mxu0 0.0
    %777 = vmatprep.subr.mxu0 0.0
    %778 = vmatpush1.msra.mxu0 0.0
    %779 = vmatprep.subr.mxu0 0.0
    %780 = vmatpush1.msra.mxu0 0.0
    %781 = vmatprep.subr.mxu0 0.0
    %782 = vmatpush1.msra.mxu0 0.0
    %783 = vmatprep.subr.mxu0 0.0
    %784 = vmatpush1.msra.mxu0 0.0
    %785 = vmatprep.subr.mxu0 0.0
    %786 = vmatpush1.msra.mxu0 0.0
    %787 = vmatprep.mubr.f32.mxu0 0.0
    %788 = vmatmul.mubr.f32.gmra.mrb[0].mxu0 %v581
    %v789 = vpop.f32.mrb[0].mxu0
    %v790 = vadd.f32 %v487, %v789
    %v791 = vpop.f32.mrb[0].mxu0
    %792 = vdwg.mxu0
    %v794 = vrot.slane %v650, 6
    %v796 = vadd.f32 %v138, %v794
    %v797 = vxor.u32 %v796, 2147483648
    %v798 = vmul.f32 %v797, 1.442695
    %v799 = vpow.pop %v798
    %v800 = vadd.f32 %v799, 1.0
    %v801 = vrcp.pop %v800
    %v802 = vmul.f32 1.0, %v801
    %v804 = vrot.slane %v720, 6
    %v806 = vadd.f32 %v224, %v804
    %v807 = vxor.u32 %v806, 2147483648
    %v808 = vmul.f32 %v807, 1.442695
    %v809 = vpow.pop %v808
    %v810 = vadd.f32 %v809, 1.0
    %v811 = vrcp.pop %v810
    %v812 = vmul.f32 1.0, %v811
    %v814 = vrot.slane %v790, 6
    %v816 = vmul.f32 %v802, %v814
    %v817 = vadd.f32 %v310, %v816
    %v818 = vtanh.pop %v817
    %v819 = vsub.f32 1.0, %v812
    %v820 = vmul.f32 %v819, %v818
    %v821 = vrot.slane %v579, 6
    %v823 = vmul.f32 %v812, %v821
    %v824 = vadd.f32 %v820, %v823
    %v826 = vrot.slane %v824, 2
    %v827 = vsel %vm333, %v826, 0
    %829 = vmatprep.subr.mxu0 0.0
    %830 = vmatpush1.msra.mxu0 %v318
    %831 = vmatprep.subr.mxu0 0.0
    %832 = vmatpush1.msra.mxu0 %v319
    %833 = vmatprep.subr.mxu0 0.0
    %834 = vmatpush1.msra.mxu0 0.0
    %835 = vmatprep.subr.mxu0 0.0
    %836 = vmatpush1.msra.mxu0 0.0
    %837 = vmatprep.subr.mxu0 0.0
    %838 = vmatpush1.msra.mxu0 0.0
    %839 = vmatprep.subr.mxu0 0.0
    %840 = vmatpush1.msra.mxu0 0.0
    %841 = vmatprep.subr.mxu0 0.0
    %842 = vmatpush1.msra.mxu0 0.0
    %843 = vmatprep.subr.mxu0 0.0
    %844 = vmatpush1.msra.mxu0 0.0
    %845 = vmatprep.subr.mxu0 0.0
    %846 = vmatpush1.msra.mxu0 0.0
    %847 = vmatprep.subr.mxu0 0.0
    %848 = vmatpush1.msra.mxu0 0.0
    %849 = vmatprep.subr.mxu0 0.0
    %850 = vmatpush1.msra.mxu0 0.0
    %851 = vmatprep.subr.mxu0 0.0
    %852 = vmatpush1.msra.mxu0 0.0
    %853 = vmatprep.subr.mxu0 0.0
    %854 = vmatpush1.msra.mxu0 0.0
    %855 = vmatprep.subr.mxu0 0.0
    %856 = vmatpush1.msra.mxu0 0.0
    %857 = vmatprep.subr.mxu0 0.0
    %858 = vmatpush1.msra.mxu0 0.0
    %859 = vmatprep.subr.mxu0 0.0
    %860 = vmatpush1.msra.mxu0 0.0
    %861 = vmatprep.subr.mxu0 0.0
    %862 = vmatpush1.msra.mxu0 0.0
    %863 = vmatprep.subr.mxu0 0.0
    %864 = vmatpush1.msra.mxu0 0.0
    %865 = vmatprep.subr.mxu0 0.0
    %866 = vmatpush1.msra.mxu0 0.0
    %867 = vmatprep.subr.mxu0 0.0
    %868 = vmatpush1.msra.mxu0 0.0
    %869 = vmatprep.subr.mxu0 0.0
    %870 = vmatpush1.msra.mxu0 0.0
    %871 = vmatprep.subr.mxu0 0.0
    %872 = vmatpush1.msra.mxu0 0.0
    %873 = vmatprep.subr.mxu0 0.0
    %874 = vmatpush1.msra.mxu0 0.0
    %875 = vmatprep.subr.mxu0 0.0
    %876 = vmatpush1.msra.mxu0 0.0
    %877 = vmatprep.subr.mxu0 0.0
    %878 = vmatpush1.msra.mxu0 0.0
    %879 = vmatprep.subr.mxu0 0.0
    %880 = vmatpush1.msra.mxu0 0.0
    %881 = vmatprep.subr.mxu0 0.0
    %882 = vmatpush1.msra.mxu0 0.0
    %883 = vmatprep.subr.mxu0 0.0
    %884 = vmatpush1.msra.mxu0 0.0
    %885 = vmatprep.subr.mxu0 0.0
    %886 = vmatpush1.msra.mxu0 0.0
    %887 = vmatprep.subr.mxu0 0.0
    %888 = vmatpush1.msra.mxu0 0.0
    %889 = vmatprep.subr.mxu0 0.0
    %890 = vmatpush1.msra.mxu0 0.0
    %891 = vmatprep.subr.mxu0 0.0
    %892 = vmatpush1.msra.mxu0 0.0
    %893 = vmatprep.mubr.f32.mxu0 0.0
    %894 = vmatmul.mubr.f32.gmra.mrb[0].mxu0 %v827
    %v895 = vpop.f32.mrb[0].mxu0
    %v896 = vadd.f32 %v331, %v895
    %v897 = vpop.f32.mrb[0].mxu0
    %898 = vdwg.mxu0
    %899 = vmatprep.subr.mxu0 0.0
    %900 = vmatpush1.msra.mxu0 %v320
    %901 = vmatprep.subr.mxu0 0.0
    %902 = vmatpush1.msra.mxu0 %v321
    %903 = vmatprep.subr.mxu0 0.0
    %904 = vmatpush1.msra.mxu0 0.0
    %905 = vmatprep.subr.mxu0 0.0
    %906 = vmatpush1.msra.mxu0 0.0
    %907 = vmatprep.subr.mxu0 0.0
    %908 = vmatpush1.msra.mxu0 0.0
    %909 = vmatprep.subr.mxu0 0.0
    %910 = vmatpush1.msra.mxu0 0.0
    %911 = vmatprep.subr.mxu0 0.0
    %912 = vmatpush1.msra.mxu0 0.0
    %913 = vmatprep.subr.mxu0 0.0
    %914 = vmatpush1.msra.mxu0 0.0
    %915 = vmatprep.subr.mxu0 0.0
    %916 = vmatpush1.msra.mxu0 0.0
    %917 = vmatprep.subr.mxu0 0.0
    %918 = vmatpush1.msra.mxu0 0.0
    %919 = vmatprep.subr.mxu0 0.0
    %920 = vmatpush1.msra.mxu0 0.0
    %921 = vmatprep.subr.mxu0 0.0
    %922 = vmatpush1.msra.mxu0 0.0
    %923 = vmatprep.subr.mxu0 0.0
    %924 = vmatpush1.msra.mxu0 0.0
    %925 = vmatprep.subr.mxu0 0.0
    %926 = vmatpush1.msra.mxu0 0.0
    %927 = vmatprep.subr.mxu0 0.0
    %928 = vmatpush1.msra.mxu0 0.0
    %929 = vmatprep.subr.mxu0 0.0
    %930 = vmatpush1.msra.mxu0 0.0
    %931 = vmatprep.subr.mxu0 0.0
    %932 = vmatpush1.msra.mxu0 0.0
    %933 = vmatprep.subr.mxu0 0.0
    %934 = vmatpush1.msra.mxu0 0.0
    %935 = vmatprep.subr.mxu0 0.0
    %936 = vmatpush1.msra.mxu0 0.0
    %937 = vmatprep.subr.mxu0 0.0
    %938 = vmatpush1.msra.mxu0 0.0
    %939 = vmatprep.subr.mxu0 0.0
    %940 = vmatpush1.msra.mxu0 0.0
    %941 = vmatprep.subr.mxu0 0.0
    %942 = vmatpush1.msra.mxu0 0.0
    %943 = vmatprep.subr.mxu0 0.0
    %944 = vmatpush1.msra.mxu0 0.0
    %945 = vmatprep.subr.mxu0 0.0
    %946 = vmatpush1.msra.mxu0 0.0
    %947 = vmatprep.subr.mxu0 0.0
    %948 = vmatpush1.msra.mxu0 0.0
    %949 = vmatprep.subr.mxu0 0.0
    %950 = vmatpush1.msra.mxu0 0.0
    %951 = vmatprep.subr.mxu0 0.0
    %952 = vmatpush1.msra.mxu0 0.0
    %953 = vmatprep.subr.mxu0 0.0
    %954 = vmatpush1.msra.mxu0 0.0
    %955 = vmatprep.subr.mxu0 0.0
    %956 = vmatpush1.msra.mxu0 0.0
    %957 = vmatprep.subr.mxu0 0.0
    %958 = vmatpush1.msra.mxu0 0.0
    %959 = vmatprep.subr.mxu0 0.0
    %960 = vmatpush1.msra.mxu0 0.0
    %961 = vmatprep.subr.mxu0 0.0
    %962 = vmatpush1.msra.mxu0 0.0
    %963 = vmatprep.mubr.f32.mxu0 0.0
    %964 = vmatmul.mubr.f32.gmra.mrb[0].mxu0 %v827
    %v965 = vpop.f32.mrb[0].mxu0
    %v966 = vadd.f32 %v411, %v965
    %v967 = vpop.f32.mrb[0].mxu0
    %968 = vdwg.mxu0
    %969 = vmatprep.subr.mxu0 0.0
    %970 = vmatpush1.msra.mxu0 %v322
    %971 = vmatprep.subr.mxu0 0.0
    %972 = vmatpush1.msra.mxu0 %v323
    %973 = vmatprep.subr.mxu0 0.0
    %974 = vmatpush1.msra.mxu0 0.0
    %975 = vmatprep.subr.mxu0 0.0
    %976 = vmatpush1.msra.mxu0 0.0
    %977 = vmatprep.subr.mxu0 0.0
    %978 = vmatpush1.msra.mxu0 0.0
    %979 = vmatprep.subr.mxu0 0.0
    %980 = vmatpush1.msra.mxu0 0.0
    %981 = vmatprep.subr.mxu0 0.0
    %982 = vmatpush1.msra.mxu0 0.0
    %983 = vmatprep.subr.mxu0 0.0
    %984 = vmatpush1.msra.mxu0 0.0
    %985 = vmatprep.subr.mxu0 0.0
    %986 = vmatpush1.msra.mxu0 0.0
    %987 = vmatprep.subr.mxu0 0.0
    %988 = vmatpush1.msra.mxu0 0.0
    %989 = vmatprep.subr.mxu0 0.0
    %990 = vmatpush1.msra.mxu0 0.0
    %991 = vmatprep.subr.mxu0 0.0
    %992 = vmatpush1.msra.mxu0 0.0
    %993 = vmatprep.subr.mxu0 0.0
    %994 = vmatpush1.msra.mxu0 0.0
    %995 = vmatprep.subr.mxu0 0.0
    %996 = vmatpush1.msra.mxu0 0.0
    %997 = vmatprep.subr.mxu0 0.0
    %998 = vmatpush1.msra.mxu0 0.0
    %999 = vmatprep.subr.mxu0 0.0
    %1000 = vmatpush1.msra.mxu0 0.0
    %1001 = vmatprep.subr.mxu0 0.0
    %1002 = vmatpush1.msra.mxu0 0.0
    %1003 = vmatprep.subr.mxu0 0.0
    %1004 = vmatpush1.msra.mxu0 0.0
    %1005 = vmatprep.subr.mxu0 0.0
    %1006 = vmatpush1.msra.mxu0 0.0
    %1007 = vmatprep.subr.mxu0 0.0
    %1008 = vmatpush1.msra.mxu0 0.0
    %1009 = vmatprep.subr.mxu0 0.0
    %1010 = vmatpush1.msra.mxu0 0.0
    %1011 = vmatprep.subr.mxu0 0.0
    %1012 = vmatpush1.msra.mxu0 0.0
    %1013 = vmatprep.subr.mxu0 0.0
    %1014 = vmatpush1.msra.mxu0 0.0
    %1015 = vmatprep.subr.mxu0 0.0
    %1016 = vmatpush1.msra.mxu0 0.0
    %1017 = vmatprep.subr.mxu0 0.0
    %1018 = vmatpush1.msra.mxu0 0.0
    %1019 = vmatprep.subr.mxu0 0.0
    %1020 = vmatpush1.msra.mxu0 0.0
    %1021 = vmatprep.subr.mxu0 0.0
    %1022 = vmatpush1.msra.mxu0 0.0
    %1023 = vmatprep.subr.mxu0 0.0
    %1024 = vmatpush1.msra.mxu0 0.0
    %1025 = vmatprep.subr.mxu0 0.0
    %1026 = vmatpush1.msra.mxu0 0.0
    %1027 = vmatprep.subr.mxu0 0.0
    %1028 = vmatpush1.msra.mxu0 0.0
    %1029 = vmatprep.subr.mxu0 0.0
    %1030 = vmatpush1.msra.mxu0 0.0
    %1031 = vmatprep.subr.mxu0 0.0
    %1032 = vmatpush1.msra.mxu0 0.0
    %1033 = vmatprep.mubr.f32.mxu0 0.0
    %1034 = vmatmul.mubr.f32.gmra.mrb[0].mxu0 %v827
    %v1035 = vpop.f32.mrb[0].mxu0
    %v1036 = vadd.f32 %v487, %v1035
    %v1037 = vpop.f32.mrb[0].mxu0
    %1038 = vdwg.mxu0
    %v1040 = vrot.slane %v896, 4
    %v1042 = vadd.f32 %v138, %v1040
    %v1043 = vxor.u32 %v1042, 2147483648
    %v1044 = vmul.f32 %v1043, 1.442695
    %v1045 = vpow.pop %v1044
    %v1046 = vadd.f32 %v1045, 1.0
    %v1047 = vrcp.pop %v1046
    %v1048 = vmul.f32 1.0, %v1047
    %v1050 = vrot.slane %v966, 4
    %v1052 = vadd.f32 %v224, %v1050
    %v1053 = vxor.u32 %v1052, 2147483648
    %v1054 = vmul.f32 %v1053, 1.442695
    %v1055 = vpow.pop %v1054
    %v1056 = vadd.f32 %v1055, 1.0
    %v1057 = vrcp.pop %v1056
    %v1058 = vmul.f32 1.0, %v1057
    %v1060 = vrot.slane %v1036, 4
    %v1062 = vmul.f32 %v1048, %v1060
    %v1063 = vadd.f32 %v310, %v1062
    %v1064 = vtanh.pop %v1063
    %v1065 = vsub.f32 1.0, %v1058
    %v1066 = vmul.f32 %v1065, %v1064
    %v1067 = vrot.slane %v824, 6
    %v1069 = vmul.f32 %v1058, %v1067
    %v1070 = vadd.f32 %v1066, %v1069
    %v1072 = vrot.slane %v1070, 4
    %v1073 = vsel %vm333, %v1072, 0
    %1075 = vmatprep.subr.mxu0 0.0
    %1076 = vmatpush1.msra.mxu0 %v318
    %1077 = vmatprep.subr.mxu0 0.0
    %1078 = vmatpush1.msra.mxu0 %v319
    %1079 = vmatprep.subr.mxu0 0.0
    %1080 = vmatpush1.msra.mxu0 0.0
    %1081 = vmatprep.subr.mxu0 0.0
    %1082 = vmatpush1.msra.mxu0 0.0
    %1083 = vmatprep.subr.mxu0 0.0
    %1084 = vmatpush1.msra.mxu0 0.0
    %1085 = vmatprep.subr.mxu0 0.0
    %1086 = vmatpush1.msra.mxu0 0.0
    %1087 = vmatprep.subr.mxu0 0.0
    %1088 = vmatpush1.msra.mxu0 0.0
    %1089 = vmatprep.subr.mxu0 0.0
    %1090 = vmatpush1.msra.mxu0 0.0
    %1091 = vmatprep.subr.mxu0 0.0
    %1092 = vmatpush1.msra.mxu0 0.0
    %1093 = vmatprep.subr.mxu0 0.0
    %1094 = vmatpush1.msra.mxu0 0.0
    %1095 = vmatprep.subr.mxu0 0.0
    %1096 = vmatpush1.msra.mxu0 0.0
    %1097 = vmatprep.subr.mxu0 0.0
    %1098 = vmatpush1.msra.mxu0 0.0
    %1099 = vmatprep.subr.mxu0 0.0
    %1100 = vmatpush1.msra.mxu0 0.0
    %1101 = vmatprep.subr.mxu0 0.0
    %1102 = vmatpush1.msra.mxu0 0.0
    %1103 = vmatprep.subr.mxu0 0.0
    %1104 = vmatpush1.msra.mxu0 0.0
    %1105 = vmatprep.subr.mxu0 0.0
    %1106 = vmatpush1.msra.mxu0 0.0
    %1107 = vmatprep.subr.mxu0 0.0
    %1108 = vmatpush1.msra.mxu0 0.0
    %1109 = vmatprep.subr.mxu0 0.0
    %1110 = vmatpush1.msra.mxu0 0.0
    %1111 = vmatprep.subr.mxu0 0.0
    %1112 = vmatpush1.msra.mxu0 0.0
    %1113 = vmatprep.subr.mxu0 0.0
    %1114 = vmatpush1.msra.mxu0 0.0
    %1115 = vmatprep.subr.mxu0 0.0
    %1116 = vmatpush1.msra.mxu0 0.0
    %1117 = vmatprep.subr.mxu0 0.0
    %1118 = vmatpush1.msra.mxu0 0.0
    %1119 = vmatprep.subr.mxu0 0.0
    %1120 = vmatpush1.msra.mxu0 0.0
    %1121 = vmatprep.subr.mxu0 0.0
    %1122 = vmatpush1.msra.mxu0 0.0
    %1123 = vmatprep.subr.mxu0 0.0
    %1124 = vmatpush1.msra.mxu0 0.0
    %1125 = vmatprep.subr.mxu0 0.0
    %1126 = vmatpush1.msra.mxu0 0.0
    %1127 = vmatprep.subr.mxu0 0.0
    %1128 = vmatpush1.msra.mxu0 0.0
    %1129 = vmatprep.subr.mxu0 0.0
    %1130 = vmatpush1.msra.mxu0 0.0
    %1131 = vmatprep.subr.mxu0 0.0
    %1132 = vmatpush1.msra.mxu0 0.0
    %1133 = vmatprep.subr.mxu0 0.0
    %1134 = vmatpush1.msra.mxu0 0.0
    %1135 = vmatprep.subr.mxu0 0.0
    %1136 = vmatpush1.msra.mxu0 0.0
    %1137 = vmatprep.subr.mxu0 0.0
    %1138 = vmatpush1.msra.mxu0 0.0
    %1139 = vmatprep.mubr.f32.mxu0 0.0
    %1140 = vmatmul.mubr.f32.gmra.mrb[0].mxu0 %v1073
    %v1141 = vpop.f32.mrb[0].mxu0
    %v1142 = vadd.f32 %v331, %v1141
    %v1143 = vpop.f32.mrb[0].mxu0
    %1144 = vdwg.mxu0
    %1145 = vmatprep.subr.mxu0 0.0
    %1146 = vmatpush1.msra.mxu0 %v320
    %1147 = vmatprep.subr.mxu0 0.0
    %1148 = vmatpush1.msra.mxu0 %v321
    %1149 = vmatprep.subr.mxu0 0.0
    %1150 = vmatpush1.msra.mxu0 0.0
    %1151 = vmatprep.subr.mxu0 0.0
    %1152 = vmatpush1.msra.mxu0 0.0
    %1153 = vmatprep.subr.mxu0 0.0
    %1154 = vmatpush1.msra.mxu0 0.0
    %1155 = vmatprep.subr.mxu0 0.0
    %1156 = vmatpush1.msra.mxu0 0.0
    %1157 = vmatprep.subr.mxu0 0.0
    %1158 = vmatpush1.msra.mxu0 0.0
    %1159 = vmatprep.subr.mxu0 0.0
    %1160 = vmatpush1.msra.mxu0 0.0
    %1161 = vmatprep.subr.mxu0 0.0
    %1162 = vmatpush1.msra.mxu0 0.0
    %1163 = vmatprep.subr.mxu0 0.0
    %1164 = vmatpush1.msra.mxu0 0.0
    %1165 = vmatprep.subr.mxu0 0.0
    %1166 = vmatpush1.msra.mxu0 0.0
    %1167 = vmatprep.subr.mxu0 0.0
    %1168 = vmatpush1.msra.mxu0 0.0
    %1169 = vmatprep.subr.mxu0 0.0
    %1170 = vmatpush1.msra.mxu0 0.0
    %1171 = vmatprep.subr.mxu0 0.0
    %1172 = vmatpush1.msra.mxu0 0.0
    %1173 = vmatprep.subr.mxu0 0.0
    %1174 = vmatpush1.msra.mxu0 0.0
    %1175 = vmatprep.subr.mxu0 0.0
    %1176 = vmatpush1.msra.mxu0 0.0
    %1177 = vmatprep.subr.mxu0 0.0
    %1178 = vmatpush1.msra.mxu0 0.0
    %1179 = vmatprep.subr.mxu0 0.0
    %1180 = vmatpush1.msra.mxu0 0.0
    %1181 = vmatprep.subr.mxu0 0.0
    %1182 = vmatpush1.msra.mxu0 0.0
    %1183 = vmatprep.subr.mxu0 0.0
    %1184 = vmatpush1.msra.mxu0 0.0
    %1185 = vmatprep.subr.mxu0 0.0
    %1186 = vmatpush1.msra.mxu0 0.0
    %1187 = vmatprep.subr.mxu0 0.0
    %1188 = vmatpush1.msra.mxu0 0.0
    %1189 = vmatprep.subr.mxu0 0.0
    %1190 = vmatpush1.msra.mxu0 0.0
    %1191 = vmatprep.subr.mxu0 0.0
    %1192 = vmatpush1.msra.mxu0 0.0
    %1193 = vmatprep.subr.mxu0 0.0
    %1194 = vmatpush1.msra.mxu0 0.0
    %1195 = vmatprep.subr.mxu0 0.0
    %1196 = vmatpush1.msra.mxu0 0.0
    %1197 = vmatprep.subr.mxu0 0.0
    %1198 = vmatpush1.msra.mxu0 0.0
    %1199 = vmatprep.subr.mxu0 0.0
    %1200 = vmatpush1.msra.mxu0 0.0
    %1201 = vmatprep.subr.mxu0 0.0
    %1202 = vmatpush1.msra.mxu0 0.0
    %1203 = vmatprep.subr.mxu0 0.0
    %1204 = vmatpush1.msra.mxu0 0.0
    %1205 = vmatprep.subr.mxu0 0.0
    %1206 = vmatpush1.msra.mxu0 0.0
    %1207 = vmatprep.subr.mxu0 0.0
    %1208 = vmatpush1.msra.mxu0 0.0
    %1209 = vmatprep.mubr.f32.mxu0 0.0
    %1210 = vmatmul.mubr.f32.gmra.mrb[0].mxu0 %v1073
    %v1211 = vpop.f32.mrb[0].mxu0
    %v1212 = vadd.f32 %v411, %v1211
    %v1213 = vpop.f32.mrb[0].mxu0
    %1214 = vdwg.mxu0
    %1215 = vmatprep.subr.mxu0 0.0
    %1216 = vmatpush1.msra.mxu0 %v322
    %1217 = vmatprep.subr.mxu0 0.0
    %1218 = vmatpush1.msra.mxu0 %v323
    %1219 = vmatprep.subr.mxu0 0.0
    %1220 = vmatpush1.msra.mxu0 0.0
    %1221 = vmatprep.subr.mxu0 0.0
    %1222 = vmatpush1.msra.mxu0 0.0
    %1223 = vmatprep.subr.mxu0 0.0
    %1224 = vmatpush1.msra.mxu0 0.0
    %1225 = vmatprep.subr.mxu0 0.0
    %1226 = vmatpush1.msra.mxu0 0.0
    %1227 = vmatprep.subr.mxu0 0.0
    %1228 = vmatpush1.msra.mxu0 0.0
    %1229 = vmatprep.subr.mxu0 0.0
    %1230 = vmatpush1.msra.mxu0 0.0
    %1231 = vmatprep.subr.mxu0 0.0
    %1232 = vmatpush1.msra.mxu0 0.0
    %1233 = vmatprep.subr.mxu0 0.0
    %1234 = vmatpush1.msra.mxu0 0.0
    %1235 = vmatprep.subr.mxu0 0.0
    %1236 = vmatpush1.msra.mxu0 0.0
    %1237 = vmatprep.subr.mxu0 0.0
    %1238 = vmatpush1.msra.mxu0 0.0
    %1239 = vmatprep.subr.mxu0 0.0
    %1240 = vmatpush1.msra.mxu0 0.0
    %1241 = vmatprep.subr.mxu0 0.0
    %1242 = vmatpush1.msra.mxu0 0.0
    %1243 = vmatprep.subr.mxu0 0.0
    %1244 = vmatpush1.msra.mxu0 0.0
    %1245 = vmatprep.subr.mxu0 0.0
    %1246 = vmatpush1.msra.mxu0 0.0
    %1247 = vmatprep.subr.mxu0 0.0
    %1248 = vmatpush1.msra.mxu0 0.0
    %1249 = vmatprep.subr.mxu0 0.0
    %1250 = vmatpush1.msra.mxu0 0.0
    %1251 = vmatprep.subr.mxu0 0.0
    %1252 = vmatpush1.msra.mxu0 0.0
    %1253 = vmatprep.subr.mxu0 0.0
    %1254 = vmatpush1.msra.mxu0 0.0
    %1255 = vmatprep.subr.mxu0 0.0
    %1256 = vmatpush1.msra.mxu0 0.0
    %1257 = vmatprep.subr.mxu0 0.0
    %1258 = vmatpush1.msra.mxu0 0.0
    %1259 = vmatprep.subr.mxu0 0.0
    %1260 = vmatpush1.msra.mxu0 0.0
    %1261 = vmatprep.subr.mxu0 0.0
    %1262 = vmatpush1.msra.mxu0 0.0
    %1263 = vmatprep.subr.mxu0 0.0
    %1264 = vmatpush1.msra.mxu0 0.0
    %1265 = vmatprep.subr.mxu0 0.0
    %1266 = vmatpush1.msra.mxu0 0.0
    %1267 = vmatprep.subr.mxu0 0.0
    %1268 = vmatpush1.msra.mxu0 0.0
    %1269 = vmatprep.subr.mxu0 0.0
    %1270 = vmatpush1.msra.mxu0 0.0
    %1271 = vmatprep.subr.mxu0 0.0
    %1272 = vmatpush1.msra.mxu0 0.0
    %1273 = vmatprep.subr.mxu0 0.0
    %1274 = vmatpush1.msra.mxu0 0.0
    %1275 = vmatprep.subr.mxu0 0.0
    %1276 = vmatpush1.msra.mxu0 0.0
    %1277 = vmatprep.subr.mxu0 0.0
    %1278 = vmatpush1.msra.mxu0 0.0
    %1279 = vmatprep.mubr.f32.mxu0 0.0
    %1280 = vmatmul.mubr.f32.gmra.mrb[0].mxu0 %v1073
    %v1281 = vpop.f32.mrb[0].mxu0
    %v1282 = vadd.f32 %v487, %v1281
    %v1283 = vpop.f32.mrb[0].mxu0
    %1284 = vdwg.mxu0
    %v1286 = vrot.slane %v1142, 2
    %v1288 = vadd.f32 %v138, %v1286
    %v1289 = vxor.u32 %v1288, 2147483648
    %v1290 = vmul.f32 %v1289, 1.442695
    %v1291 = vpow.pop %v1290
    %v1292 = vadd.f32 %v1291, 1.0
    %v1293 = vrcp.pop %v1292
    %v1294 = vmul.f32 1.0, %v1293
    %v1296 = vrot.slane %v1212, 2
    %v1298 = vadd.f32 %v224, %v1296
    %v1299 = vxor.u32 %v1298, 2147483648
    %v1300 = vmul.f32 %v1299, 1.442695
    %v1301 = vpow.pop %v1300
    %v1302 = vadd.f32 %v1301, 1.0
    %v1303 = vrcp.pop %v1302
    %v1304 = vmul.f32 1.0, %v1303
    %v1306 = vrot.slane %v1282, 2
    %v1308 = vmul.f32 %v1294, %v1306
    %v1309 = vadd.f32 %v310, %v1308
    %v1310 = vtanh.pop %v1309
    %v1311 = vsub.f32 1.0, %v1304
    %v1312 = vmul.f32 %v1311, %v1310
    %v1313 = vrot.slane %v1070, 6
    %v1315 = vmul.f32 %v1304, %v1313
    %v1316 = vadd.f32 %v1312, %v1315
    %v1318 = vrot.slane %v1316, 6
    %v1319 = vsel %vm333, %v1318, 0
    %1321 = vmatprep.subr.mxu0 0.0
    %1322 = vmatpush1.msra.mxu0 %v318
    %1323 = vmatprep.subr.mxu0 0.0
    %1324 = vmatpush1.msra.mxu0 %v319
    %1325 = vmatprep.subr.mxu0 0.0
    %1326 = vmatpush1.msra.mxu0 0.0
    %1327 = vmatprep.subr.mxu0 0.0
    %1328 = vmatpush1.msra.mxu0 0.0
    %1329 = vmatprep.subr.mxu0 0.0
    %1330 = vmatpush1.msra.mxu0 0.0
    %1331 = vmatprep.subr.mxu0 0.0
    %1332 = vmatpush1.msra.mxu0 0.0
    %1333 = vmatprep.subr.mxu0 0.0
    %1334 = vmatpush1.msra.mxu0 0.0
    %1335 = vmatprep.subr.mxu0 0.0
    %1336 = vmatpush1.msra.mxu0 0.0
    %1337 = vmatprep.subr.mxu0 0.0
    %1338 = vmatpush1.msra.mxu0 0.0
    %1339 = vmatprep.subr.mxu0 0.0
    %1340 = vmatpush1.msra.mxu0 0.0
    %1341 = vmatprep.subr.mxu0 0.0
    %1342 = vmatpush1.msra.mxu0 0.0
    %1343 = vmatprep.subr.mxu0 0.0
    %1344 = vmatpush1.msra.mxu0 0.0
    %1345 = vmatprep.subr.mxu0 0.0
    %1346 = vmatpush1.msra.mxu0 0.0
    %1347 = vmatprep.subr.mxu0 0.0
    %1348 = vmatpush1.msra.mxu0 0.0
    %1349 = vmatprep.subr.mxu0 0.0
    %1350 = vmatpush1.msra.mxu0 0.0
    %1351 = vmatprep.subr.mxu0 0.0
    %1352 = vmatpush1.msra.mxu0 0.0
    %1353 = vmatprep.subr.mxu0 0.0
    %1354 = vmatpush1.msra.mxu0 0.0
    %1355 = vmatprep.subr.mxu0 0.0
    %1356 = vmatpush1.msra.mxu0 0.0
    %1357 = vmatprep.subr.mxu0 0.0
    %1358 = vmatpush1.msra.mxu0 0.0
    %1359 = vmatprep.subr.mxu0 0.0
    %1360 = vmatpush1.msra.mxu0 0.0
    %1361 = vmatprep.subr.mxu0 0.0
    %1362 = vmatpush1.msra.mxu0 0.0
    %1363 = vmatprep.subr.mxu0 0.0
    %1364 = vmatpush1.msra.mxu0 0.0
    %1365 = vmatprep.subr.mxu0 0.0
    %1366 = vmatpush1.msra.mxu0 0.0
    %1367 = vmatprep.subr.mxu0 0.0
    %1368 = vmatpush1.msra.mxu0 0.0
    %1369 = vmatprep.subr.mxu0 0.0
    %1370 = vmatpush1.msra.mxu0 0.0
    %1371 = vmatprep.subr.mxu0 0.0
    %1372 = vmatpush1.msra.mxu0 0.0
    %1373 = vmatprep.subr.mxu0 0.0
    %1374 = vmatpush1.msra.mxu0 0.0
    %1375 = vmatprep.subr.mxu0 0.0
    %1376 = vmatpush1.msra.mxu0 0.0
    %1377 = vmatprep.subr.mxu0 0.0
    %1378 = vmatpush1.msra.mxu0 0.0
    %1379 = vmatprep.subr.mxu0 0.0
    %1380 = vmatpush1.msra.mxu0 0.0
    %1381 = vmatprep.subr.mxu0 0.0
    %1382 = vmatpush1.msra.mxu0 0.0
    %1383 = vmatprep.subr.mxu0 0.0
    %1384 = vmatpush1.msra.mxu0 0.0
    %1385 = vmatprep.mubr.f32.mxu0 0.0
    %1386 = vmatmul.mubr.f32.gmra.mrb[0].mxu0 %v1319
    %v1387 = vpop.f32.mrb[0].mxu0
    %v1388 = vadd.f32 %v331, %v1387
    %v1389 = vpop.f32.mrb[0].mxu0
    %1390 = vdwg.mxu0
    %1391 = vmatprep.subr.mxu0 0.0
    %1392 = vmatpush1.msra.mxu0 %v320
    %1393 = vmatprep.subr.mxu0 0.0
    %1394 = vmatpush1.msra.mxu0 %v321
    %1395 = vmatprep.subr.mxu0 0.0
    %1396 = vmatpush1.msra.mxu0 0.0
    %1397 = vmatprep.subr.mxu0 0.0
    %1398 = vmatpush1.msra.mxu0 0.0
    %1399 = vmatprep.subr.mxu0 0.0
    %1400 = vmatpush1.msra.mxu0 0.0
    %1401 = vmatprep.subr.mxu0 0.0
    %1402 = vmatpush1.msra.mxu0 0.0
    %1403 = vmatprep.subr.mxu0 0.0
    %1404 = vmatpush1.msra.mxu0 0.0
    %1405 = vmatprep.subr.mxu0 0.0
    %1406 = vmatpush1.msra.mxu0 0.0
    %1407 = vmatprep.subr.mxu0 0.0
    %1408 = vmatpush1.msra.mxu0 0.0
    %1409 = vmatprep.subr.mxu0 0.0
    %1410 = vmatpush1.msra.mxu0 0.0
    %1411 = vmatprep.subr.mxu0 0.0
    %1412 = vmatpush1.msra.mxu0 0.0
    %1413 = vmatprep.subr.mxu0 0.0
    %1414 = vmatpush1.msra.mxu0 0.0
    %1415 = vmatprep.subr.mxu0 0.0
    %1416 = vmatpush1.msra.mxu0 0.0
    %1417 = vmatprep.subr.mxu0 0.0
    %1418 = vmatpush1.msra.mxu0 0.0
    %1419 = vmatprep.subr.mxu0 0.0
    %1420 = vmatpush1.msra.mxu0 0.0
    %1421 = vmatprep.subr.mxu0 0.0
    %1422 = vmatpush1.msra.mxu0 0.0
    %1423 = vmatprep.subr.mxu0 0.0
    %1424 = vmatpush1.msra.mxu0 0.0
    %1425 = vmatprep.subr.mxu0 0.0
    %1426 = vmatpush1.msra.mxu0 0.0
    %1427 = vmatprep.subr.mxu0 0.0
    %1428 = vmatpush1.msra.mxu0 0.0
    %1429 = vmatprep.subr.mxu0 0.0
    %1430 = vmatpush1.msra.mxu0 0.0
    %1431 = vmatprep.subr.mxu0 0.0
    %1432 = vmatpush1.msra.mxu0 0.0
    %1433 = vmatprep.subr.mxu0 0.0
    %1434 = vmatpush1.msra.mxu0 0.0
    %1435 = vmatprep.subr.mxu0 0.0
    %1436 = vmatpush1.msra.mxu0 0.0
    %1437 = vmatprep.subr.mxu0 0.0
    %1438 = vmatpush1.msra.mxu0 0.0
    %1439 = vmatprep.subr.mxu0 0.0
    %1440 = vmatpush1.msra.mxu0 0.0
    %1441 = vmatprep.subr.mxu0 0.0
    %1442 = vmatpush1.msra.mxu0 0.0
    %1443 = vmatprep.subr.mxu0 0.0
    %1444 = vmatpush1.msra.mxu0 0.0
    %1445 = vmatprep.subr.mxu0 0.0
    %1446 = vmatpush1.msra.mxu0 0.0
    %1447 = vmatprep.subr.mxu0 0.0
    %1448 = vmatpush1.msra.mxu0 0.0
    %1449 = vmatprep.subr.mxu0 0.0
    %1450 = vmatpush1.msra.mxu0 0.0
    %1451 = vmatprep.subr.mxu0 0.0
    %1452 = vmatpush1.msra.mxu0 0.0
    %1453 = vmatprep.subr.mxu0 0.0
    %1454 = vmatpush1.msra.mxu0 0.0
    %1455 = vmatprep.mubr.f32.mxu0 0.0
    %1456 = vmatmul.mubr.f32.gmra.mrb[0].mxu0 %v1319
    %v1457 = vpop.f32.mrb[0].mxu0
    %v1458 = vadd.f32 %v411, %v1457
    %v1459 = vpop.f32.mrb[0].mxu0
    %1460 = vdwg.mxu0
    %1461 = vmatprep.subr.mxu0 0.0
    %1462 = vmatpush1.msra.mxu0 %v322
    %1463 = vmatprep.subr.mxu0 0.0
    %1464 = vmatpush1.msra.mxu0 %v323
    %1465 = vmatprep.subr.mxu0 0.0
    %1466 = vmatpush1.msra.mxu0 0.0
    %1467 = vmatprep.subr.mxu0 0.0
    %1468 = vmatpush1.msra.mxu0 0.0
    %1469 = vmatprep.subr.mxu0 0.0
    %1470 = vmatpush1.msra.mxu0 0.0
    %1471 = vmatprep.subr.mxu0 0.0
    %1472 = vmatpush1.msra.mxu0 0.0
    %1473 = vmatprep.subr.mxu0 0.0
    %1474 = vmatpush1.msra.mxu0 0.0
    %1475 = vmatprep.subr.mxu0 0.0
    %1476 = vmatpush1.msra.mxu0 0.0
    %1477 = vmatprep.subr.mxu0 0.0
    %1478 = vmatpush1.msra.mxu0 0.0
    %1479 = vmatprep.subr.mxu0 0.0
    %1480 = vmatpush1.msra.mxu0 0.0
    %1481 = vmatprep.subr.mxu0 0.0
    %1482 = vmatpush1.msra.mxu0 0.0
    %1483 = vmatprep.subr.mxu0 0.0
    %1484 = vmatpush1.msra.mxu0 0.0
    %1485 = vmatprep.subr.mxu0 0.0
    %1486 = vmatpush1.msra.mxu0 0.0
    %1487 = vmatprep.subr.mxu0 0.0
    %1488 = vmatpush1.msra.mxu0 0.0
    %1489 = vmatprep.subr.mxu0 0.0
    %1490 = vmatpush1.msra.mxu0 0.0
    %1491 = vmatprep.subr.mxu0 0.0
    %1492 = vmatpush1.msra.mxu0 0.0
    %1493 = vmatprep.subr.mxu0 0.0
    %1494 = vmatpush1.msra.mxu0 0.0
    %1495 = vmatprep.subr.mxu0 0.0
    %1496 = vmatpush1.msra.mxu0 0.0
    %1497 = vmatprep.subr.mxu0 0.0
    %1498 = vmatpush1.msra.mxu0 0.0
    %1499 = vmatprep.subr.mxu0 0.0
    %1500 = vmatpush1.msra.mxu0 0.0
    %1501 = vmatprep.subr.mxu0 0.0
    %1502 = vmatpush1.msra.mxu0 0.0
    %1503 = vmatprep.subr.mxu0 0.0
    %1504 = vmatpush1.msra.mxu0 0.0
    %1505 = vmatprep.subr.mxu0 0.0
    %1506 = vmatpush1.msra.mxu0 0.0
    %1507 = vmatprep.subr.mxu0 0.0
    %1508 = vmatpush1.msra.mxu0 0.0
    %1509 = vmatprep.subr.mxu0 0.0
    %1510 = vmatpush1.msra.mxu0 0.0
    %1511 = vmatprep.subr.mxu0 0.0
    %1512 = vmatpush1.msra.mxu0 0.0
    %1513 = vmatprep.subr.mxu0 0.0
    %1514 = vmatpush1.msra.mxu0 0.0
    %1515 = vmatprep.subr.mxu0 0.0
    %1516 = vmatpush1.msra.mxu0 0.0
    %1517 = vmatprep.subr.mxu0 0.0
    %1518 = vmatpush1.msra.mxu0 0.0
    %1519 = vmatprep.subr.mxu0 0.0
    %1520 = vmatpush1.msra.mxu0 0.0
    %1521 = vmatprep.subr.mxu0 0.0
    %1522 = vmatpush1.msra.mxu0 0.0
    %1523 = vmatprep.subr.mxu0 0.0
    %1524 = vmatpush1.msra.mxu0 0.0
    %1525 = vmatprep.mubr.f32.mxu0 0.0
    %1526 = vmatmul.mubr.f32.gmra.mrb[0].mxu0 %v1319
    %v1527 = vpop.f32.mrb[0].mxu0
    %v1528 = vadd.f32 %v487, %v1527
    %v1529 = vpop.f32.mrb[0].mxu0
    %1530 = vdwg.mxu0
    %v1531 = vadd.f32 %v143, %v1388
    %v1532 = vxor.u32 %v1531, 2147483648
    %v1533 = vmul.f32 %v1532, 1.442695
    %v1534 = vpow.pop %v1533
    %v1535 = vadd.f32 %v1534, 1.0
    %v1536 = vrcp.pop %v1535
    %v1537 = vmul.f32 1.0, %v1536
    %v1538 = vadd.f32 %v229, %v1458
    %v1539 = vxor.u32 %v1538, 2147483648
    %v1540 = vmul.f32 %v1539, 1.442695
    %v1541 = vpow.pop %v1540
    %v1542 = vadd.f32 %v1541, 1.0
    %v1543 = vrcp.pop %v1542
    %v1544 = vmul.f32 1.0, %v1543
    %v1545 = vmul.f32 %v1537, %v1528
    %v1546 = vadd.f32 %v315, %v1545
    %v1547 = vtanh.pop %v1546
    %v1548 = vsub.f32 1.0, %v1544
    %v1549 = vmul.f32 %v1548, %v1547
    %v1551 = vmul.f32 %v1544, %v1318
    %v1552 = vadd.f32 %v1549, %v1551
    %v1554 = vsel %vm333, %v1552, 0
    %1556 = vmatprep.subr.mxu0 0.0
    %1557 = vmatpush1.msra.mxu0 %v318
    %1558 = vmatprep.subr.mxu0 0.0
    %1559 = vmatpush1.msra.mxu0 %v319
    %1560 = vmatprep.subr.mxu0 0.0
    %1561 = vmatpush1.msra.mxu0 0.0
    %1562 = vmatprep.subr.mxu0 0.0
    %1563 = vmatpush1.msra.mxu0 0.0
    %1564 = vmatprep.subr.mxu0 0.0
    %1565 = vmatpush1.msra.mxu0 0.0
    %1566 = vmatprep.subr.mxu0 0.0
    %1567 = vmatpush1.msra.mxu0 0.0
    %1568 = vmatprep.subr.mxu0 0.0
    %1569 = vmatpush1.msra.mxu0 0.0
    %1570 = vmatprep.subr.mxu0 0.0
    %1571 = vmatpush1.msra.mxu0 0.0
    %1572 = vmatprep.subr.mxu0 0.0
    %1573 = vmatpush1.msra.mxu0 0.0
    %1574 = vmatprep.subr.mxu0 0.0
    %1575 = vmatpush1.msra.mxu0 0.0
    %1576 = vmatprep.subr.mxu0 0.0
    %1577 = vmatpush1.msra.mxu0 0.0
    %1578 = vmatprep.subr.mxu0 0.0
    %1579 = vmatpush1.msra.mxu0 0.0
    %1580 = vmatprep.subr.mxu0 0.0
    %1581 = vmatpush1.msra.mxu0 0.0
    %1582 = vmatprep.subr.mxu0 0.0
    %1583 = vmatpush1.msra.mxu0 0.0
    %1584 = vmatprep.subr.mxu0 0.0
    %1585 = vmatpush1.msra.mxu0 0.0
    %1586 = vmatprep.subr.mxu0 0.0
    %1587 = vmatpush1.msra.mxu0 0.0
    %1588 = vmatprep.subr.mxu0 0.0
    %1589 = vmatpush1.msra.mxu0 0.0
    %1590 = vmatprep.subr.mxu0 0.0
    %1591 = vmatpush1.msra.mxu0 0.0
    %1592 = vmatprep.subr.mxu0 0.0
    %1593 = vmatpush1.msra.mxu0 0.0
    %1594 = vmatprep.subr.mxu0 0.0
    %1595 = vmatpush1.msra.mxu0 0.0
    %1596 = vmatprep.subr.mxu0 0.0
    %1597 = vmatpush1.msra.mxu0 0.0
    %1598 = vmatprep.subr.mxu0 0.0
    %1599 = vmatpush1.msra.mxu0 0.0
    %1600 = vmatprep.subr.mxu0 0.0
    %1601 = vmatpush1.msra.mxu0 0.0
    %1602 = vmatprep.subr.mxu0 0.0
    %1603 = vmatpush1.msra.mxu0 0.0
    %1604 = vmatprep.subr.mxu0 0.0
    %1605 = vmatpush1.msra.mxu0 0.0
    %1606 = vmatprep.subr.mxu0 0.0
    %1607 = vmatpush1.msra.mxu0 0.0
    %1608 = vmatprep.subr.mxu0 0.0
    %1609 = vmatpush1.msra.mxu0 0.0
    %1610 = vmatprep.subr.mxu0 0.0
    %1611 = vmatpush1.msra.mxu0 0.0
    %1612 = vmatprep.subr.mxu0 0.0
    %1613 = vmatpush1.msra.mxu0 0.0
    %1614 = vmatprep.subr.mxu0 0.0
    %1615 = vmatpush1.msra.mxu0 0.0
    %1616 = vmatprep.subr.mxu0 0.0
    %1617 = vmatpush1.msra.mxu0 0.0
    %1618 = vmatprep.subr.mxu0 0.0
    %1619 = vmatpush1.msra.mxu0 0.0
    %1620 = vmatprep.mubr.f32.mxu0 0.0
    %1621 = vmatmul.mubr.f32.gmra.mrb[0].mxu0 %v1554
    %v1622 = vpop.f32.mrb[0].mxu0
    %v1623 = vadd.f32 %v331, %v1622
    %v1624 = vpop.f32.mrb[0].mxu0
    %1625 = vdwg.mxu0
    %1626 = vmatprep.subr.mxu0 0.0
    %1627 = vmatpush1.msra.mxu0 %v320
    %1628 = vmatprep.subr.mxu0 0.0
    %1629 = vmatpush1.msra.mxu0 %v321
    %1630 = vmatprep.subr.mxu0 0.0
    %1631 = vmatpush1.msra.mxu0 0.0
    %1632 = vmatprep.subr.mxu0 0.0
    %1633 = vmatpush1.msra.mxu0 0.0
    %1634 = vmatprep.subr.mxu0 0.0
    %1635 = vmatpush1.msra.mxu0 0.0
    %1636 = vmatprep.subr.mxu0 0.0
    %1637 = vmatpush1.msra.mxu0 0.0
    %1638 = vmatprep.subr.mxu0 0.0
    %1639 = vmatpush1.msra.mxu0 0.0
    %1640 = vmatprep.subr.mxu0 0.0
    %1641 = vmatpush1.msra.mxu0 0.0
    %1642 = vmatprep.subr.mxu0 0.0
    %1643 = vmatpush1.msra.mxu0 0.0
    %1644 = vmatprep.subr.mxu0 0.0
    %1645 = vmatpush1.msra.mxu0 0.0
    %1646 = vmatprep.subr.mxu0 0.0
    %1647 = vmatpush1.msra.mxu0 0.0
    %1648 = vmatprep.subr.mxu0 0.0
    %1649 = vmatpush1.msra.mxu0 0.0
    %1650 = vmatprep.subr.mxu0 0.0
    %1651 = vmatpush1.msra.mxu0 0.0
    %1652 = vmatprep.subr.mxu0 0.0
    %1653 = vmatpush1.msra.mxu0 0.0
    %1654 = vmatprep.subr.mxu0 0.0
    %1655 = vmatpush1.msra.mxu0 0.0
    %1656 = vmatprep.subr.mxu0 0.0
    %1657 = vmatpush1.msra.mxu0 0.0
    %1658 = vmatprep.subr.mxu0 0.0
    %1659 = vmatpush1.msra.mxu0 0.0
    %1660 = vmatprep.subr.mxu0 0.0
    %1661 = vmatpush1.msra.mxu0 0.0
    %1662 = vmatprep.subr.mxu0 0.0
    %1663 = vmatpush1.msra.mxu0 0.0
    %1664 = vmatprep.subr.mxu0 0.0
    %1665 = vmatpush1.msra.mxu0 0.0
    %1666 = vmatprep.subr.mxu0 0.0
    %1667 = vmatpush1.msra.mxu0 0.0
    %1668 = vmatprep.subr.mxu0 0.0
    %1669 = vmatpush1.msra.mxu0 0.0
    %1670 = vmatprep.subr.mxu0 0.0
    %1671 = vmatpush1.msra.mxu0 0.0
    %1672 = vmatprep.subr.mxu0 0.0
    %1673 = vmatpush1.msra.mxu0 0.0
    %1674 = vmatprep.subr.mxu0 0.0
    %1675 = vmatpush1.msra.mxu0 0.0
    %1676 = vmatprep.subr.mxu0 0.0
    %1677 = vmatpush1.msra.mxu0 0.0
    %1678 = vmatprep.subr.mxu0 0.0
    %1679 = vmatpush1.msra.mxu0 0.0
    %1680 = vmatprep.subr.mxu0 0.0
    %1681 = vmatpush1.msra.mxu0 0.0
    %1682 = vmatprep.subr.mxu0 0.0
    %1683 = vmatpush1.msra.mxu0 0.0
    %1684 = vmatprep.subr.mxu0 0.0
    %1685 = vmatpush1.msra.mxu0 0.0
    %1686 = vmatprep.subr.mxu0 0.0
    %1687 = vmatpush1.msra.mxu0 0.0
    %1688 = vmatprep.subr.mxu0 0.0
    %1689 = vmatpush1.msra.mxu0 0.0
    %1690 = vmatprep.mubr.f32.mxu0 0.0
    %1691 = vmatmul.mubr.f32.gmra.mrb[0].mxu0 %v1554
    %v1692 = vpop.f32.mrb[0].mxu0
    %v1693 = vadd.f32 %v411, %v1692
    %v1694 = vpop.f32.mrb[0].mxu0
    %1695 = vdwg.mxu0
    %1696 = vmatprep.subr.mxu0 0.0
    %1697 = vmatpush1.msra.mxu0 %v322
    %1698 = vmatprep.subr.mxu0 0.0
    %1699 = vmatpush1.msra.mxu0 %v323
    %1700 = vmatprep.subr.mxu0 0.0
    %1701 = vmatpush1.msra.mxu0 0.0
    %1702 = vmatprep.subr.mxu0 0.0
    %1703 = vmatpush1.msra.mxu0 0.0
    %1704 = vmatprep.subr.mxu0 0.0
    %1705 = vmatpush1.msra.mxu0 0.0
    %1706 = vmatprep.subr.mxu0 0.0
    %1707 = vmatpush1.msra.mxu0 0.0
    %1708 = vmatprep.subr.mxu0 0.0
    %1709 = vmatpush1.msra.mxu0 0.0
    %1710 = vmatprep.subr.mxu0 0.0
    %1711 = vmatpush1.msra.mxu0 0.0
    %1712 = vmatprep.subr.mxu0 0.0
    %1713 = vmatpush1.msra.mxu0 0.0
    %1714 = vmatprep.subr.mxu0 0.0
    %1715 = vmatpush1.msra.mxu0 0.0
    %1716 = vmatprep.subr.mxu0 0.0
    %1717 = vmatpush1.msra.mxu0 0.0
    %1718 = vmatprep.subr.mxu0 0.0
    %1719 = vmatpush1.msra.mxu0 0.0
    %1720 = vmatprep.subr.mxu0 0.0
    %1721 = vmatpush1.msra.mxu0 0.0
    %1722 = vmatprep.subr.mxu0 0.0
    %1723 = vmatpush1.msra.mxu0 0.0
    %1724 = vmatprep.subr.mxu0 0.0
    %1725 = vmatpush1.msra.mxu0 0.0
    %1726 = vmatprep.subr.mxu0 0.0
    %1727 = vmatpush1.msra.mxu0 0.0
    %1728 = vmatprep.subr.mxu0 0.0
    %1729 = vmatpush1.msra.mxu0 0.0
    %1730 = vmatprep.subr.mxu0 0.0
    %1731 = vmatpush1.msra.mxu0 0.0
    %1732 = vmatprep.subr.mxu0 0.0
    %1733 = vmatpush1.msra.mxu0 0.0
    %1734 = vmatprep.subr.mxu0 0.0
    %1735 = vmatpush1.msra.mxu0 0.0
    %1736 = vmatprep.subr.mxu0 0.0
    %1737 = vmatpush1.msra.mxu0 0.0
    %1738 = vmatprep.subr.mxu0 0.0
    %1739 = vmatpush1.msra.mxu0 0.0
    %1740 = vmatprep.subr.mxu0 0.0
    %1741 = vmatpush1.msra.mxu0 0.0
    %1742 = vmatprep.subr.mxu0 0.0
    %1743 = vmatpush1.msra.mxu0 0.0
    %1744 = vmatprep.subr.mxu0 0.0
    %1745 = vmatpush1.msra.mxu0 0.0
    %1746 = vmatprep.subr.mxu0 0.0
    %1747 = vmatpush1.msra.mxu0 0.0
    %1748 = vmatprep.subr.mxu0 0.0
    %1749 = vmatpush1.msra.mxu0 0.0
    %1750 = vmatprep.subr.mxu0 0.0
    %1751 = vmatpush1.msra.mxu0 0.0
    %1752 = vmatprep.subr.mxu0 0.0
    %1753 = vmatpush1.msra.mxu0 0.0
    %1754 = vmatprep.subr.mxu0 0.0
    %1755 = vmatpush1.msra.mxu0 0.0
    %1756 = vmatprep.subr.mxu0 0.0
    %1757 = vmatpush1.msra.mxu0 0.0
    %1758 = vmatprep.subr.mxu0 0.0
    %1759 = vmatpush1.msra.mxu0 0.0
    %1760 = vmatprep.mubr.f32.mxu0 0.0
    %1761 = vmatmul.mubr.f32.gmra.mrb[0].mxu0 %v1554
    %v1762 = vpop.f32.mrb[0].mxu0
    %v1763 = vadd.f32 %v487, %v1762
    %v1764 = vpop.f32.mrb[0].mxu0
    %1765 = vdwg.mxu0
    %v1767 = vrot.slane %v1623, 6
    %v1769 = vadd.f32 %v143, %v1767
    %v1770 = vxor.u32 %v1769, 2147483648
    %v1771 = vmul.f32 %v1770, 1.442695
    %v1772 = vpow.pop %v1771
    %v1773 = vadd.f32 %v1772, 1.0
    %v1774 = vrcp.pop %v1773
    %v1775 = vmul.f32 1.0, %v1774
    %v1777 = vrot.slane %v1693, 6
    %v1779 = vadd.f32 %v229, %v1777
    %v1780 = vxor.u32 %v1779, 2147483648
    %v1781 = vmul.f32 %v1780, 1.442695
    %v1782 = vpow.pop %v1781
    %v1783 = vadd.f32 %v1782, 1.0
    %v1784 = vrcp.pop %v1783
    %v1785 = vmul.f32 1.0, %v1784
    %v1787 = vrot.slane %v1763, 6
    %v1789 = vmul.f32 %v1775, %v1787
    %v1790 = vadd.f32 %v315, %v1789
    %v1791 = vtanh.pop %v1790
    %v1792 = vsub.f32 1.0, %v1785
    %v1793 = vmul.f32 %v1792, %v1791
    %v1794 = vrot.slane %v1552, 6
    %v1796 = vmul.f32 %v1785, %v1794
    %v1797 = vadd.f32 %v1793, %v1796
    %v1799 = vrot.slane %v1797, 2
    %v1800 = vsel %vm333, %v1799, 0
    %1802 = vmatprep.subr.mxu0 0.0
    %1803 = vmatpush1.msra.mxu0 %v318
    %1804 = vmatprep.subr.mxu0 0.0
    %1805 = vmatpush1.msra.mxu0 %v319
    %1806 = vmatprep.subr.mxu0 0.0
    %1807 = vmatpush1.msra.mxu0 0.0
    %1808 = vmatprep.subr.mxu0 0.0
    %1809 = vmatpush1.msra.mxu0 0.0
    %1810 = vmatprep.subr.mxu0 0.0
    %1811 = vmatpush1.msra.mxu0 0.0
    %1812 = vmatprep.subr.mxu0 0.0
    %1813 = vmatpush1.msra.mxu0 0.0
    %1814 = vmatprep.subr.mxu0 0.0
    %1815 = vmatpush1.msra.mxu0 0.0
    %1816 = vmatprep.subr.mxu0 0.0
    %1817 = vmatpush1.msra.mxu0 0.0
    %1818 = vmatprep.subr.mxu0 0.0
    %1819 = vmatpush1.msra.mxu0 0.0
    %1820 = vmatprep.subr.mxu0 0.0
    %1821 = vmatpush1.msra.mxu0 0.0
    %1822 = vmatprep.subr.mxu0 0.0
    %1823 = vmatpush1.msra.mxu0 0.0
    %1824 = vmatprep.subr.mxu0 0.0
    %1825 = vmatpush1.msra.mxu0 0.0
    %1826 = vmatprep.subr.mxu0 0.0
    %1827 = vmatpush1.msra.mxu0 0.0
    %1828 = vmatprep.subr.mxu0 0.0
    %1829 = vmatpush1.msra.mxu0 0.0
    %1830 = vmatprep.subr.mxu0 0.0
    %1831 = vmatpush1.msra.mxu0 0.0
    %1832 = vmatprep.subr.mxu0 0.0
    %1833 = vmatpush1.msra.mxu0 0.0
    %1834 = vmatprep.subr.mxu0 0.0
    %1835 = vmatpush1.msra.mxu0 0.0
    %1836 = vmatprep.subr.mxu0 0.0
    %1837 = vmatpush1.msra.mxu0 0.0
    %1838 = vmatprep.subr.mxu0 0.0
    %1839 = vmatpush1.msra.mxu0 0.0
    %1840 = vmatprep.subr.mxu0 0.0
    %1841 = vmatpush1.msra.mxu0 0.0
    %1842 = vmatprep.subr.mxu0 0.0
    %1843 = vmatpush1.msra.mxu0 0.0
    %1844 = vmatprep.subr.mxu0 0.0
    %1845 = vmatpush1.msra.mxu0 0.0
    %1846 = vmatprep.subr.mxu0 0.0
    %1847 = vmatpush1.msra.mxu0 0.0
    %1848 = vmatprep.subr.mxu0 0.0
    %1849 = vmatpush1.msra.mxu0 0.0
    %1850 = vmatprep.subr.mxu0 0.0
    %1851 = vmatpush1.msra.mxu0 0.0
    %1852 = vmatprep.subr.mxu0 0.0
    %1853 = vmatpush1.msra.mxu0 0.0
    %1854 = vmatprep.subr.mxu0 0.0
    %1855 = vmatpush1.msra.mxu0 0.0
    %1856 = vmatprep.subr.mxu0 0.0
    %1857 = vmatpush1.msra.mxu0 0.0
    %1858 = vmatprep.subr.mxu0 0.0
    %1859 = vmatpush1.msra.mxu0 0.0
    %1860 = vmatprep.subr.mxu0 0.0
    %1861 = vmatpush1.msra.mxu0 0.0
    %1862 = vmatprep.subr.mxu0 0.0
    %1863 = vmatpush1.msra.mxu0 0.0
    %1864 = vmatprep.subr.mxu0 0.0
    %1865 = vmatpush1.msra.mxu0 0.0
    %1866 = vmatprep.mubr.f32.mxu0 0.0
    %1867 = vmatmul.mubr.f32.gmra.mrb[0].mxu0 %v1800
    %v1868 = vpop.f32.mrb[0].mxu0
    %v1869 = vadd.f32 %v331, %v1868
    %v1870 = vpop.f32.mrb[0].mxu0
    %1871 = vdwg.mxu0
    %1872 = vmatprep.subr.mxu0 0.0
    %1873 = vmatpush1.msra.mxu0 %v320
    %1874 = vmatprep.subr.mxu0 0.0
    %1875 = vmatpush1.msra.mxu0 %v321
    %1876 = vmatprep.subr.mxu0 0.0
    %1877 = vmatpush1.msra.mxu0 0.0
    %1878 = vmatprep.subr.mxu0 0.0
    %1879 = vmatpush1.msra.mxu0 0.0
    %1880 = vmatprep.subr.mxu0 0.0
    %1881 = vmatpush1.msra.mxu0 0.0
    %1882 = vmatprep.subr.mxu0 0.0
    %1883 = vmatpush1.msra.mxu0 0.0
    %1884 = vmatprep.subr.mxu0 0.0
    %1885 = vmatpush1.msra.mxu0 0.0
    %1886 = vmatprep.subr.mxu0 0.0
    %1887 = vmatpush1.msra.mxu0 0.0
    %1888 = vmatprep.subr.mxu0 0.0
    %1889 = vmatpush1.msra.mxu0 0.0
    %1890 = vmatprep.subr.mxu0 0.0
    %1891 = vmatpush1.msra.mxu0 0.0
    %1892 = vmatprep.subr.mxu0 0.0
    %1893 = vmatpush1.msra.mxu0 0.0
    %1894 = vmatprep.subr.mxu0 0.0
    %1895 = vmatpush1.msra.mxu0 0.0
    %1896 = vmatprep.subr.mxu0 0.0
    %1897 = vmatpush1.msra.mxu0 0.0
    %1898 = vmatprep.subr.mxu0 0.0
    %1899 = vmatpush1.msra.mxu0 0.0
    %1900 = vmatprep.subr.mxu0 0.0
    %1901 = vmatpush1.msra.mxu0 0.0
    %1902 = vmatprep.subr.mxu0 0.0
    %1903 = vmatpush1.msra.mxu0 0.0
    %1904 = vmatprep.subr.mxu0 0.0
    %1905 = vmatpush1.msra.mxu0 0.0
    %1906 = vmatprep.subr.mxu0 0.0
    %1907 = vmatpush1.msra.mxu0 0.0
    %1908 = vmatprep.subr.mxu0 0.0
    %1909 = vmatpush1.msra.mxu0 0.0
    %1910 = vmatprep.subr.mxu0 0.0
    %1911 = vmatpush1.msra.mxu0 0.0
    %1912 = vmatprep.subr.mxu0 0.0
    %1913 = vmatpush1.msra.mxu0 0.0
    %1914 = vmatprep.subr.mxu0 0.0
    %1915 = vmatpush1.msra.mxu0 0.0
    %1916 = vmatprep.subr.mxu0 0.0
    %1917 = vmatpush1.msra.mxu0 0.0
    %1918 = vmatprep.subr.mxu0 0.0
    %1919 = vmatpush1.msra.mxu0 0.0
    %1920 = vmatprep.subr.mxu0 0.0
    %1921 = vmatpush1.msra.mxu0 0.0
    %1922 = vmatprep.subr.mxu0 0.0
    %1923 = vmatpush1.msra.mxu0 0.0
    %1924 = vmatprep.subr.mxu0 0.0
    %1925 = vmatpush1.msra.mxu0 0.0
    %1926 = vmatprep.subr.mxu0 0.0
    %1927 = vmatpush1.msra.mxu0 0.0
    %1928 = vmatprep.subr.mxu0 0.0
    %1929 = vmatpush1.msra.mxu0 0.0
    %1930 = vmatprep.subr.mxu0 0.0
    %1931 = vmatpush1.msra.mxu0 0.0
    %1932 = vmatprep.subr.mxu0 0.0
    %1933 = vmatpush1.msra.mxu0 0.0
    %1934 = vmatprep.subr.mxu0 0.0
    %1935 = vmatpush1.msra.mxu0 0.0
    %1936 = vmatprep.mubr.f32.mxu0 0.0
    %1937 = vmatmul.mubr.f32.gmra.mrb[0].mxu0 %v1800
    %v1938 = vpop.f32.mrb[0].mxu0
    %v1939 = vadd.f32 %v411, %v1938
    %v1940 = vpop.f32.mrb[0].mxu0
    %1941 = vdwg.mxu0
    %1942 = vmatprep.subr.mxu0 0.0
    %1943 = vmatpush1.msra.mxu0 %v322
    %1944 = vmatprep.subr.mxu0 0.0
    %1945 = vmatpush1.msra.mxu0 %v323
    %1946 = vmatprep.subr.mxu0 0.0
    %1947 = vmatpush1.msra.mxu0 0.0
    %1948 = vmatprep.subr.mxu0 0.0
    %1949 = vmatpush1.msra.mxu0 0.0
    %1950 = vmatprep.subr.mxu0 0.0
    %1951 = vmatpush1.msra.mxu0 0.0
    %1952 = vmatprep.subr.mxu0 0.0
    %1953 = vmatpush1.msra.mxu0 0.0
    %1954 = vmatprep.subr.mxu0 0.0
    %1955 = vmatpush1.msra.mxu0 0.0
    %1956 = vmatprep.subr.mxu0 0.0
    %1957 = vmatpush1.msra.mxu0 0.0
    %1958 = vmatprep.subr.mxu0 0.0
    %1959 = vmatpush1.msra.mxu0 0.0
    %1960 = vmatprep.subr.mxu0 0.0
    %1961 = vmatpush1.msra.mxu0 0.0
    %1962 = vmatprep.subr.mxu0 0.0
    %1963 = vmatpush1.msra.mxu0 0.0
    %1964 = vmatprep.subr.mxu0 0.0
    %1965 = vmatpush1.msra.mxu0 0.0
    %1966 = vmatprep.subr.mxu0 0.0
    %1967 = vmatpush1.msra.mxu0 0.0
    %1968 = vmatprep.subr.mxu0 0.0
    %1969 = vmatpush1.msra.mxu0 0.0
    %1970 = vmatprep.subr.mxu0 0.0
    %1971 = vmatpush1.msra.mxu0 0.0
    %1972 = vmatprep.subr.mxu0 0.0
    %1973 = vmatpush1.msra.mxu0 0.0
    %1974 = vmatprep.subr.mxu0 0.0
    %1975 = vmatpush1.msra.mxu0 0.0
    %1976 = vmatprep.subr.mxu0 0.0
    %1977 = vmatpush1.msra.mxu0 0.0
    %1978 = vmatprep.subr.mxu0 0.0
    %1979 = vmatpush1.msra.mxu0 0.0
    %1980 = vmatprep.subr.mxu0 0.0
    %1981 = vmatpush1.msra.mxu0 0.0
    %1982 = vmatprep.subr.mxu0 0.0
    %1983 = vmatpush1.msra.mxu0 0.0
    %1984 = vmatprep.subr.mxu0 0.0
    %1985 = vmatpush1.msra.mxu0 0.0
    %1986 = vmatprep.subr.mxu0 0.0
    %1987 = vmatpush1.msra.mxu0 0.0
    %1988 = vmatprep.subr.mxu0 0.0
    %1989 = vmatpush1.msra.mxu0 0.0
    %1990 = vmatprep.subr.mxu0 0.0
    %1991 = vmatpush1.msra.mxu0 0.0
    %1992 = vmatprep.subr.mxu0 0.0
    %1993 = vmatpush1.msra.mxu0 0.0
    %1994 = vmatprep.subr.mxu0 0.0
    %1995 = vmatpush1.msra.mxu0 0.0
    %1996 = vmatprep.subr.mxu0 0.0
    %1997 = vmatpush1.msra.mxu0 0.0
    %1998 = vmatprep.subr.mxu0 0.0
    %1999 = vmatpush1.msra.mxu0 0.0
    %2000 = vmatprep.subr.mxu0 0.0
    %2001 = vmatpush1.msra.mxu0 0.0
    %2002 = vmatprep.subr.mxu0 0.0
    %2003 = vmatpush1.msra.mxu0 0.0
    %2004 = vmatprep.subr.mxu0 0.0
    %2005 = vmatpush1.msra.mxu0 0.0
    %2006 = vmatprep.mubr.f32.mxu0 0.0
    %2007 = vmatmul.mubr.f32.gmra.mrb[0].mxu0 %v1800
    %v2008 = vpop.f32.mrb[0].mxu0
    %v2009 = vadd.f32 %v487, %v2008
    %v2010 = vpop.f32.mrb[0].mxu0
    %2011 = vdwg.mxu0
    %v2013 = vrot.slane %v1869, 4
    %v2015 = vadd.f32 %v143, %v2013
    %v2016 = vxor.u32 %v2015, 2147483648
    %v2017 = vmul.f32 %v2016, 1.442695
    %v2018 = vpow.pop %v2017
    %v2019 = vadd.f32 %v2018, 1.0
    %v2020 = vrcp.pop %v2019
    %v2021 = vmul.f32 1.0, %v2020
    %v2023 = vrot.slane %v1939, 4
    %v2025 = vadd.f32 %v229, %v2023
    %v2026 = vxor.u32 %v2025, 2147483648
    %v2027 = vmul.f32 %v2026, 1.442695
    %v2028 = vpow.pop %v2027
    %v2029 = vadd.f32 %v2028, 1.0
    %v2030 = vrcp.pop %v2029
    %v2031 = vmul.f32 1.0, %v2030
    %v2033 = vrot.slane %v2009, 4
    %v2035 = vmul.f32 %v2021, %v2033
    %v2036 = vadd.f32 %v315, %v2035
    %v2037 = vtanh.pop %v2036
    %v2038 = vsub.f32 1.0, %v2031
    %v2039 = vmul.f32 %v2038, %v2037
    %v2040 = vrot.slane %v1797, 6
    %v2042 = vmul.f32 %v2031, %v2040
    %v2043 = vadd.f32 %v2039, %v2042
    %v2045 = vrot.slane %v2043, 4
    %v2046 = vsel %vm333, %v2045, 0
    %2048 = vmatprep.subr.mxu0 0.0
    %2049 = vmatpush1.msra.mxu0 %v318
    %2050 = vmatprep.subr.mxu0 0.0
    %2051 = vmatpush1.msra.mxu0 %v319
    %2052 = vmatprep.subr.mxu0 0.0
    %2053 = vmatpush1.msra.mxu0 0.0
    %2054 = vmatprep.subr.mxu0 0.0
    %2055 = vmatpush1.msra.mxu0 0.0
    %2056 = vmatprep.subr.mxu0 0.0
    %2057 = vmatpush1.msra.mxu0 0.0
    %2058 = vmatprep.subr.mxu0 0.0
    %2059 = vmatpush1.msra.mxu0 0.0
    %2060 = vmatprep.subr.mxu0 0.0
    %2061 = vmatpush1.msra.mxu0 0.0
    %2062 = vmatprep.subr.mxu0 0.0
    %2063 = vmatpush1.msra.mxu0 0.0
    %2064 = vmatprep.subr.mxu0 0.0
    %2065 = vmatpush1.msra.mxu0 0.0
    %2066 = vmatprep.subr.mxu0 0.0
    %2067 = vmatpush1.msra.mxu0 0.0
    %2068 = vmatprep.subr.mxu0 0.0
    %2069 = vmatpush1.msra.mxu0 0.0
    %2070 = vmatprep.subr.mxu0 0.0
    %2071 = vmatpush1.msra.mxu0 0.0
    %2072 = vmatprep.subr.mxu0 0.0
    %2073 = vmatpush1.msra.mxu0 0.0
    %2074 = vmatprep.subr.mxu0 0.0
    %2075 = vmatpush1.msra.mxu0 0.0
    %2076 = vmatprep.subr.mxu0 0.0
    %2077 = vmatpush1.msra.mxu0 0.0
    %2078 = vmatprep.subr.mxu0 0.0
    %2079 = vmatpush1.msra.mxu0 0.0
    %2080 = vmatprep.subr.mxu0 0.0
    %2081 = vmatpush1.msra.mxu0 0.0
    %2082 = vmatprep.subr.mxu0 0.0
    %2083 = vmatpush1.msra.mxu0 0.0
    %2084 = vmatprep.subr.mxu0 0.0
    %2085 = vmatpush1.msra.mxu0 0.0
    %2086 = vmatprep.subr.mxu0 0.0
    %2087 = vmatpush1.msra.mxu0 0.0
    %2088 = vmatprep.subr.mxu0 0.0
    %2089 = vmatpush1.msra.mxu0 0.0
    %2090 = vmatprep.subr.mxu0 0.0
    %2091 = vmatpush1.msra.mxu0 0.0
    %2092 = vmatprep.subr.mxu0 0.0
    %2093 = vmatpush1.msra.mxu0 0.0
    %2094 = vmatprep.subr.mxu0 0.0
    %2095 = vmatpush1.msra.mxu0 0.0
    %2096 = vmatprep.subr.mxu0 0.0
    %2097 = vmatpush1.msra.mxu0 0.0
    %2098 = vmatprep.subr.mxu0 0.0
    %2099 = vmatpush1.msra.mxu0 0.0
    %2100 = vmatprep.subr.mxu0 0.0
    %2101 = vmatpush1.msra.mxu0 0.0
    %2102 = vmatprep.subr.mxu0 0.0
    %2103 = vmatpush1.msra.mxu0 0.0
    %2104 = vmatprep.subr.mxu0 0.0
    %2105 = vmatpush1.msra.mxu0 0.0
    %2106 = vmatprep.subr.mxu0 0.0
    %2107 = vmatpush1.msra.mxu0 0.0
    %2108 = vmatprep.subr.mxu0 0.0
    %2109 = vmatpush1.msra.mxu0 0.0
    %2110 = vmatprep.subr.mxu0 0.0
    %2111 = vmatpush1.msra.mxu0 0.0
    %2112 = vmatprep.mubr.f32.mxu0 0.0
    %2113 = vmatmul.mubr.f32.gmra.mrb[0].mxu0 %v2046
    %v2114 = vpop.f32.mrb[0].mxu0
    %v2115 = vadd.f32 %v331, %v2114
    %v2116 = vpop.f32.mrb[0].mxu0
    %2117 = vdwg.mxu0
    %2118 = vmatprep.subr.mxu0 0.0
    %2119 = vmatpush1.msra.mxu0 %v320
    %2120 = vmatprep.subr.mxu0 0.0
    %2121 = vmatpush1.msra.mxu0 %v321
    %2122 = vmatprep.subr.mxu0 0.0
    %2123 = vmatpush1.msra.mxu0 0.0
    %2124 = vmatprep.subr.mxu0 0.0
    %2125 = vmatpush1.msra.mxu0 0.0
    %2126 = vmatprep.subr.mxu0 0.0
    %2127 = vmatpush1.msra.mxu0 0.0
    %2128 = vmatprep.subr.mxu0 0.0
    %2129 = vmatpush1.msra.mxu0 0.0
    %2130 = vmatprep.subr.mxu0 0.0
    %2131 = vmatpush1.msra.mxu0 0.0
    %2132 = vmatprep.subr.mxu0 0.0
    %2133 = vmatpush1.msra.mxu0 0.0
    %2134 = vmatprep.subr.mxu0 0.0
    %2135 = vmatpush1.msra.mxu0 0.0
    %2136 = vmatprep.subr.mxu0 0.0
    %2137 = vmatpush1.msra.mxu0 0.0
    %2138 = vmatprep.subr.mxu0 0.0
    %2139 = vmatpush1.msra.mxu0 0.0
    %2140 = vmatprep.subr.mxu0 0.0
    %2141 = vmatpush1.msra.mxu0 0.0
    %2142 = vmatprep.subr.mxu0 0.0
    %2143 = vmatpush1.msra.mxu0 0.0
    %2144 = vmatprep.subr.mxu0 0.0
    %2145 = vmatpush1.msra.mxu0 0.0
    %2146 = vmatprep.subr.mxu0 0.0
    %2147 = vmatpush1.msra.mxu0 0.0
    %2148 = vmatprep.subr.mxu0 0.0
    %2149 = vmatpush1.msra.mxu0 0.0
    %2150 = vmatprep.subr.mxu0 0.0
    %2151 = vmatpush1.msra.mxu0 0.0
    %2152 = vmatprep.subr.mxu0 0.0
    %2153 = vmatpush1.msra.mxu0 0.0
    %2154 = vmatprep.subr.mxu0 0.0
    %2155 = vmatpush1.msra.mxu0 0.0
    %2156 = vmatprep.subr.mxu0 0.0
    %2157 = vmatpush1.msra.mxu0 0.0
    %2158 = vmatprep.subr.mxu0 0.0
    %2159 = vmatpush1.msra.mxu0 0.0
    %2160 = vmatprep.subr.mxu0 0.0
    %2161 = vmatpush1.msra.mxu0 0.0
    %2162 = vmatprep.subr.mxu0 0.0
    %2163 = vmatpush1.msra.mxu0 0.0
    %2164 = vmatprep.subr.mxu0 0.0
    %2165 = vmatpush1.msra.mxu0 0.0
    %2166 = vmatprep.subr.mxu0 0.0
    %2167 = vmatpush1.msra.mxu0 0.0
    %2168 = vmatprep.subr.mxu0 0.0
    %2169 = vmatpush1.msra.mxu0 0.0
    %2170 = vmatprep.subr.mxu0 0.0
    %2171 = vmatpush1.msra.mxu0 0.0
    %2172 = vmatprep.subr.mxu0 0.0
    %2173 = vmatpush1.msra.mxu0 0.0
    %2174 = vmatprep.subr.mxu0 0.0
    %2175 = vmatpush1.msra.mxu0 0.0
    %2176 = vmatprep.subr.mxu0 0.0
    %2177 = vmatpush1.msra.mxu0 0.0
    %2178 = vmatprep.subr.mxu0 0.0
    %2179 = vmatpush1.msra.mxu0 0.0
    %2180 = vmatprep.subr.mxu0 0.0
    %2181 = vmatpush1.msra.mxu0 0.0
    %2182 = vmatprep.mubr.f32.mxu0 0.0
    %2183 = vmatmul.mubr.f32.gmra.mrb[0].mxu0 %v2046
    %v2184 = vpop.f32.mrb[0].mxu0
    %v2185 = vadd.f32 %v411, %v2184
    %v2186 = vpop.f32.mrb[0].mxu0
    %2187 = vdwg.mxu0
    %2188 = vmatprep.subr.mxu0 0.0
    %2189 = vmatpush1.msra.mxu0 %v322
    %2190 = vmatprep.subr.mxu0 0.0
    %2191 = vmatpush1.msra.mxu0 %v323
    %2192 = vmatprep.subr.mxu0 0.0
    %2193 = vmatpush1.msra.mxu0 0.0
    %2194 = vmatprep.subr.mxu0 0.0
    %2195 = vmatpush1.msra.mxu0 0.0
    %2196 = vmatprep.subr.mxu0 0.0
    %2197 = vmatpush1.msra.mxu0 0.0
    %2198 = vmatprep.subr.mxu0 0.0
    %2199 = vmatpush1.msra.mxu0 0.0
    %2200 = vmatprep.subr.mxu0 0.0
    %2201 = vmatpush1.msra.mxu0 0.0
    %2202 = vmatprep.subr.mxu0 0.0
    %2203 = vmatpush1.msra.mxu0 0.0
    %2204 = vmatprep.subr.mxu0 0.0
    %2205 = vmatpush1.msra.mxu0 0.0
    %2206 = vmatprep.subr.mxu0 0.0
    %2207 = vmatpush1.msra.mxu0 0.0
    %2208 = vmatprep.subr.mxu0 0.0
    %2209 = vmatpush1.msra.mxu0 0.0
    %2210 = vmatprep.subr.mxu0 0.0
    %2211 = vmatpush1.msra.mxu0 0.0
    %2212 = vmatprep.subr.mxu0 0.0
    %2213 = vmatpush1.msra.mxu0 0.0
    %2214 = vmatprep.subr.mxu0 0.0
    %2215 = vmatpush1.msra.mxu0 0.0
    %2216 = vmatprep.subr.mxu0 0.0
    %2217 = vmatpush1.msra.mxu0 0.0
    %2218 = vmatprep.subr.mxu0 0.0
    %2219 = vmatpush1.msra.mxu0 0.0
    %2220 = vmatprep.subr.mxu0 0.0
    %2221 = vmatpush1.msra.mxu0 0.0
    %2222 = vmatprep.subr.mxu0 0.0
    %2223 = vmatpush1.msra.mxu0 0.0
    %2224 = vmatprep.subr.mxu0 0.0
    %2225 = vmatpush1.msra.mxu0 0.0
    %2226 = vmatprep.subr.mxu0 0.0
    %2227 = vmatpush1.msra.mxu0 0.0
    %2228 = vmatprep.subr.mxu0 0.0
    %2229 = vmatpush1.msra.mxu0 0.0
    %2230 = vmatprep.subr.mxu0 0.0
    %2231 = vmatpush1.msra.mxu0 0.0
    %2232 = vmatprep.subr.mxu0 0.0
    %2233 = vmatpush1.msra.mxu0 0.0
    %2234 = vmatprep.subr.mxu0 0.0
    %2235 = vmatpush1.msra.mxu0 0.0
    %2236 = vmatprep.subr.mxu0 0.0
    %2237 = vmatpush1.msra.mxu0 0.0
    %2238 = vmatprep.subr.mxu0 0.0
    %2239 = vmatpush1.msra.mxu0 0.0
    %2240 = vmatprep.subr.mxu0 0.0
    %2241 = vmatpush1.msra.mxu0 0.0
    %2242 = vmatprep.subr.mxu0 0.0
    %2243 = vmatpush1.msra.mxu0 0.0
    %2244 = vmatprep.subr.mxu0 0.0
    %2245 = vmatpush1.msra.mxu0 0.0
    %2246 = vmatprep.subr.mxu0 0.0
    %2247 = vmatpush1.msra.mxu0 0.0
    %2248 = vmatprep.subr.mxu0 0.0
    %2249 = vmatpush1.msra.mxu0 0.0
    %2250 = vmatprep.subr.mxu0 0.0
    %2251 = vmatpush1.msra.mxu0 0.0
    %2252 = vmatprep.mubr.f32.mxu0 0.0
    %2253 = vmatmul.mubr.f32.gmra.mrb[0].mxu0 %v2046
    %v2254 = vpop.f32.mrb[0].mxu0
    %v2255 = vadd.f32 %v487, %v2254
    %v2256 = vpop.f32.mrb[0].mxu0
    %2257 = vdwg.mxu0
    %v2259 = vrot.slane %v2115, 2
    %v2261 = vadd.f32 %v143, %v2259
    %v2262 = vxor.u32 %v2261, 2147483648
    %v2263 = vmul.f32 %v2262, 1.442695
    %v2264 = vpow.pop %v2263
    %v2265 = vadd.f32 %v2264, 1.0
    %v2266 = vrcp.pop %v2265
    %v2267 = vmul.f32 1.0, %v2266
    %v2269 = vrot.slane %v2185, 2
    %v2271 = vadd.f32 %v229, %v2269
    %v2272 = vxor.u32 %v2271, 2147483648
    %v2273 = vmul.f32 %v2272, 1.442695
    %v2274 = vpow.pop %v2273
    %v2275 = vadd.f32 %v2274, 1.0
    %v2276 = vrcp.pop %v2275
    %v2277 = vmul.f32 1.0, %v2276
    %v2279 = vrot.slane %v2255, 2
    %v2281 = vmul.f32 %v2267, %v2279
    %v2282 = vadd.f32 %v315, %v2281
    %v2283 = vtanh.pop %v2282
    %v2284 = vsub.f32 1.0, %v2277
    %v2285 = vmul.f32 %v2284, %v2283
    %v2286 = vrot.slane %v2043, 6
    %v2288 = vmul.f32 %v2277, %v2286
    %v2289 = vadd.f32 %v2285, %v2288
    %v2290 = vld [vmem:[%s13] sm:$0xff]
    %v2291 = vld [vmem:[%s13 + $0x8] sm:$0xff]
    %v2292 = vld [vmem:[%s14] sm:$0x1]
    %v2294 = vlaneseq
    %v2295 = vshrl.u32 %v2294, 7
    %v2296 = vsub.s32 0, %v2295
    %v2297 = vrot.slane %v2292, %v2296
    %v2300 = vrot.slane %v2289, 6
    %v2301 = vsel %vm333, %v2300, 0
    %2303 = vmatprep.subr.mxu0 0.0
    %2304 = vmatpush1.msra.mxu0 %v2290
    %2305 = vmatprep.subr.mxu0 0.0
    %2306 = vmatpush1.msra.mxu0 %v2291
    %2307 = vmatprep.subr.mxu0 0.0
    %2308 = vmatpush1.msra.mxu0 0.0
    %2309 = vmatprep.subr.mxu0 0.0
    %2310 = vmatpush1.msra.mxu0 0.0
    %2311 = vmatprep.subr.mxu0 0.0
    %2312 = vmatpush1.msra.mxu0 0.0
    %2313 = vmatprep.subr.mxu0 0.0
    %2314 = vmatpush1.msra.mxu0 0.0
    %2315 = vmatprep.subr.mxu0 0.0
    %2316 = vmatpush1.msra.mxu0 0.0
    %2317 = vmatprep.subr.mxu0 0.0
    %2318 = vmatpush1.msra.mxu0 0.0
    %2319 = vmatprep.subr.mxu0 0.0
    %2320 = vmatpush1.msra.mxu0 0.0
    %2321 = vmatprep.subr.mxu0 0.0
    %2322 = vmatpush1.msra.mxu0 0.0
    %2323 = vmatprep.subr.mxu0 0.0
    %2324 = vmatpush1.msra.mxu0 0.0
    %2325 = vmatprep.subr.mxu0 0.0
    %2326 = vmatpush1.msra.mxu0 0.0
    %2327 = vmatprep.subr.mxu0 0.0
    %2328 = vmatpush1.msra.mxu0 0.0
    %2329 = vmatprep.subr.mxu0 0.0
    %2330 = vmatpush1.msra.mxu0 0.0
    %2331 = vmatprep.subr.mxu0 0.0
    %2332 = vmatpush1.msra.mxu0 0.0
    %2333 = vmatprep.subr.mxu0 0.0
    %2334 = vmatpush1.msra.mxu0 0.0
    %2335 = vmatprep.subr.mxu0 0.0
    %2336 = vmatpush1.msra.mxu0 0.0
    %2337 = vmatprep.subr.mxu0 0.0
    %2338 = vmatpush1.msra.mxu0 0.0
    %2339 = vmatprep.subr.mxu0 0.0
    %2340 = vmatpush1.msra.mxu0 0.0
    %2341 = vmatprep.subr.mxu0 0.0
    %2342 = vmatpush1.msra.mxu0 0.0
    %2343 = vmatprep.subr.mxu0 0.0
    %2344 = vmatpush1.msra.mxu0 0.0
    %2345 = vmatprep.subr.mxu0 0.0
    %2346 = vmatpush1.msra.mxu0 0.0
    %2347 = vmatprep.subr.mxu0 0.0
    %2348 = vmatpush1.msra.mxu0 0.0
    %2349 = vmatprep.subr.mxu0 0.0
    %2350 = vmatpush1.msra.mxu0 0.0
    %2351 = vmatprep.subr.mxu0 0.0
    %2352 = vmatpush1.msra.mxu0 0.0
    %2353 = vmatprep.subr.mxu0 0.0
    %2354 = vmatpush1.msra.mxu0 0.0
    %2355 = vmatprep.subr.mxu0 0.0
    %2356 = vmatpush1.msra.mxu0 0.0
    %2357 = vmatprep.subr.mxu0 0.0
    %2358 = vmatpush1.msra.mxu0 0.0
    %2359 = vmatprep.subr.mxu0 0.0
    %2360 = vmatpush1.msra.mxu0 0.0
    %2361 = vmatprep.subr.mxu0 0.0
    %2362 = vmatpush1.msra.mxu0 0.0
    %2363 = vmatprep.subr.mxu0 0.0
    %2364 = vmatpush1.msra.mxu0 0.0
    %2365 = vmatprep.subr.mxu0 0.0
    %2366 = vmatpush1.msra.mxu0 0.0
    %2367 = vmatprep.mubr.f32.mxu0 0.0
    %2368 = vmatmul.mubr.f32.gmra.mrb[0].mxu0 %v2301
    %v2369 = vpop.f32.mrb[0].mxu0
    %v2370 = vadd.f32 %v2297, %v2369
    %v2371 = vpop.f32.mrb[0].mxu0
    %2372 = vdwg.mxu0
    %vm2373 = vcmask 9216
    %2374 = vst.msk [vmem:[#allocation2] sm:$0x3] %vm2373, %v2370
    // Predicated region
    $region62: #{tpu_custom_call.1} parent=1 // pred_check
      _
    $region63: #{tpu_custom_call.1} parent=1 // pred_check_branch
      %2376 = sbr.rel (0) target = $region65
    $region64: #{tpu_custom_call.1} parent=1 // pred_region
      %s2378 = ssub.s32 32, 32
      %2379 = vsyncadd [#allocation3], %s2378
      %s2381 = sshll.u32 [#allocation2], 4
      %s2382 = int_to_ptr.vmem [resolvable:$true] %s2381
      %2384 = dma.vmem_to_hbm [thread:$0]  %s2382, 32, %s15, [#allocation3]
    $region65: #{tpu_custom_call.1} parent=1 // pred_fallthru
      _
    // Predicated region
    $region66: #{tpu_custom_call.1} parent=1 // pred_check
      _
    $region67: #{tpu_custom_call.1} parent=1 // pred_check_branch
      %2386 = sbr.rel (0) target = $region69
    $region68: #{tpu_custom_call.1} parent=1 // pred_region
      %2387 = dma.done [#allocation3], 32
    $region69: #{tpu_custom_call.1} parent=1 // pred_fallthru
      _
    %2388 = vsyncpa [#allocation3], 1

</llo_original>
